<compile_context>
chip_gen: v7x
topology: tpu7x:2x2x1
jax: 0.10.0
libtpu: 0.0.40
codegen_flags: <defaults>
</compile_context>

<pallas_src>
import math

import jax
import jax.numpy as jnp
from jax.experimental import pallas as pl
from jax.experimental.pallas import tpu as pltpu

# ----------------------------- small config ---------------------------------
VOCAB = 100
TYPE_VOCAB = 2
MAX_POS = 16
B, S, H = 2, 8, 32              # S must be a power of two (row % S uses &)
BS = B * S
N_HEADS, D_HEAD = 4, 8          # H == N_HEADS * D_HEAD
INTER = 64
N_CLASSES = 3
LANE_OUT = 128                  # lane-dense width of slab / classifier output
LN_EPS = 1e-12

# Stacked embedding-table layout (multi-hot "gather by one matmul"):
WORD_OFF = 0                    # rows 0..VOCAB-1
POS_OFF = 128                   # rows 128..128+MAX_POS-1
TYPE_OFF = POS_OFF + MAX_POS    # rows 144..145
EMB_ROWS = 256                  # padded to 2 lane-tiles for the multi-hot width

# Weight-slab row offsets (pack starts 8-aligned; bias row sits at off + K).
LN_OFF = 0                      # rows 0..5: g_emb, b_emb, g_attn, b_attn, g_ffn, b_ffn
QKV_OFF = 8                     # weight rows 8..39,   bias row 40   ([H, 3H])
WO_OFF = 48                     # weight rows 48..79,  bias row 80   ([H, H])
W1_OFF = 88                     # weight rows 88..119, bias row 120  ([H, INTER])
W2_OFF = 128                    # weight rows 128..191,bias row 192  ([INTER, H])
WP_OFF = 200                    # weight rows 200..231,bias row 232  ([H, H])
WC_OFF = 240                    # weight rows 240..271,bias row 272  ([H, 128])
SLAB_ROWS = 280


def _layer_norm(x, g, b):
    mu = jnp.mean(x, axis=-1, keepdims=True)
    var = jnp.mean(jnp.square(x - mu), axis=-1, keepdims=True)
    return (x - mu) * jax.lax.rsqrt(var + LN_EPS) * g + b


def _gelu(x):
    # tanh-approximate GELU (EUP-friendly on TPU).
    c = math.sqrt(2.0 / math.pi)
    return 0.5 * x * (1.0 + jnp.tanh(c * (x + 0.044715 * x * x * x)))


# ------------------------------ Pallas kernel --------------------------------
def transformer_kernel(tok_ref, mask_ref, emb_tab_ref, w_ref, out_ref):
    # tok_ref:     [BS, 2]  int32 -- (word_id, token_type_id) per folded row
    # mask_ref:    [B, S]   int32 -- raw attention mask (lane-dense keys)
    # emb_tab_ref: [256, H] f32   -- word/pos/type tables stacked (see *_OFF)
    # w_ref:       [280,128] f32  -- all weights + biases, lane-padded to 128
    # out_ref:     [BS, 128] f32  -- per-row logits, classes in lanes 0..N_CLASSES-1

    # ---- fused embedding "gather": multi-hot rows @ stacked table (one dot) ----
    tok = tok_ref[...]
    wid = tok[:, 0:1]                                               # [BS, 1]
    tt = tok[:, 1:2]                                                # [BS, 1]
    col = jax.lax.broadcasted_iota(jnp.int32, (BS, EMB_ROWS), 1)    # [BS, 256]
    pos = jax.lax.broadcasted_iota(jnp.int32, (BS, 1), 0) & (S - 1)  # row % S
    hot = ((col == wid)
           | (col == POS_OFF + pos)
           | (col == TYPE_OFF + tt)).astype(jnp.float32)            # [BS, 256]
    emb = jnp.dot(hot, emb_tab_ref[...],
                  preferred_element_type=jnp.float32)               # [BS, H]

    # ---- embedding LayerNorm ----
    h = _layer_norm(emb, w_ref[LN_OFF:LN_OFF + 1, 0:H],
                    w_ref[LN_OFF + 1:LN_OFF + 2, 0:H])

    # ---- fused QKV projection: one [BS,H] @ [H,3H] push, single bias add ----
    qkv = (jnp.dot(h, w_ref[QKV_OFF:QKV_OFF + H, 0:3 * H],
                   preferred_element_type=jnp.float32)
           + w_ref[QKV_OFF + H:QKV_OFF + H + 1, 0:3 * H])           # [BS, 3H]
    q3 = qkv[:, 0:H].reshape(B, S, H)
    k3 = qkv[:, H:2 * H].reshape(B, S, H)
    v3 = qkv[:, 2 * H:3 * H].reshape(B, S, H)

    # Merge (head, batch) into ONE batch axis z = head*B + b -> [NH*B, S, D];
    # a single batch dim keeps dot_general in Mosaic's supported form.
    def stack_heads(x3):
        return jnp.concatenate(
            [x3[:, :, hh * D_HEAD:(hh + 1) * D_HEAD] for hh in range(N_HEADS)],
            axis=0)
    qz, kz, vz = stack_heads(q3), stack_heads(k3), stack_heads(v3)

    # Additive key mask, built in-kernel from the raw [B, S] mask.
    bias_bk = (1.0 - mask_ref[...].astype(jnp.float32)) * -1e9      # [B, S]
    bias_zk = jnp.concatenate([bias_bk] * N_HEADS, axis=0)          # [NH*B, S]
    bias3 = jax.lax.broadcast_in_dim(bias_zk, (N_HEADS * B, S, S), (0, 2))

    scale = 1.0 / math.sqrt(D_HEAD)
    s = (jnp.einsum("zqd,zkd->zqk", qz, kz,
                    preferred_element_type=jnp.float32) * scale + bias3)
    m = jnp.max(s, axis=-1, keepdims=True)
    p = jnp.exp(s - m)
    p = p / jnp.sum(p, axis=-1, keepdims=True)                      # exact softmax
    ctx = jnp.einsum("zqk,zkd->zqd", p, vz,
                     preferred_element_type=jnp.float32)            # [NH*B, S, D]

    # Un-stack heads back onto lanes, then ONE K=H output-projection dot.
    ctx_bsh = jnp.concatenate(
        [ctx[hh * B:(hh + 1) * B] for hh in range(N_HEADS)], axis=-1)  # [B, S, H]
    attn = (jnp.dot(ctx_bsh.reshape(BS, H), w_ref[WO_OFF:WO_OFF + H, 0:H],
                    preferred_element_type=jnp.float32)
            + w_ref[WO_OFF + H:WO_OFF + H + 1, 0:H])

    h1 = _layer_norm(h + attn, w_ref[LN_OFF + 2:LN_OFF + 3, 0:H],
                     w_ref[LN_OFF + 3:LN_OFF + 4, 0:H])

    # ---- FFN ----
    ffn = _gelu(jnp.dot(h1, w_ref[W1_OFF:W1_OFF + H, 0:INTER],
                        preferred_element_type=jnp.float32)
                + w_ref[W1_OFF + H:W1_OFF + H + 1, 0:INTER])
    ffn = (jnp.dot(ffn, w_ref[W2_OFF:W2_OFF + INTER, 0:H],
                   preferred_element_type=jnp.float32)
           + w_ref[W2_OFF + INTER:W2_OFF + INTER + 1, 0:H])
    h2 = _layer_norm(h1 + ffn, w_ref[LN_OFF + 4:LN_OFF + 5, 0:H],
                     w_ref[LN_OFF + 5:LN_OFF + 6, 0:H])

    # ---- pooler + classifier for ALL BS rows -> dense [16,128] store ----
    pooled = jnp.tanh(jnp.dot(h2, w_ref[WP_OFF:WP_OFF + H, 0:H],
                              preferred_element_type=jnp.float32)
                      + w_ref[WP_OFF + H:WP_OFF + H + 1, 0:H])
    out_ref[...] = (jnp.dot(pooled, w_ref[WC_OFF:WC_OFF + H, 0:LANE_OUT],
                            preferred_element_type=jnp.float32)
                    + w_ref[WC_OFF + H:WC_OFF + H + 1, 0:LANE_OUT])


# ------------------------------ wrapper --------------------------------------
def _pack_embedding_table(p):
    tab = jnp.zeros((EMB_ROWS, H), jnp.float32)
    tab = tab.at[WORD_OFF:WORD_OFF + VOCAB].set(p["word_emb"])
    tab = tab.at[POS_OFF:POS_OFF + MAX_POS].set(p["pos_emb"])
    tab = tab.at[TYPE_OFF:TYPE_OFF + TYPE_VOCAB].set(p["type_emb"])
    return tab


def _pack_weight_slab(p):
    """Pack all 22 weight/bias tensors into one lane-dense [280, 128] slab."""
    def lane_pad(x):
        return jnp.pad(x, ((0, 0), (0, LANE_OUT - x.shape[1])))

    def pack(w, b, rows):
        blk = lane_pad(jnp.concatenate([w, b], axis=0))     # [K+1, 128]
        return jnp.pad(blk, ((0, rows - blk.shape[0]), (0, 0)))

    ln = jnp.concatenate([p["ln_e_g"], p["ln_e_b"], p["ln1_g"], p["ln1_b"],
                          p["ln2_g"], p["ln2_b"]], axis=0)  # [6, H]
    ln = jnp.pad(lane_pad(ln), ((0, QKV_OFF - 6), (0, 0)))  # [8, 128]

    wqkv = jnp.concatenate([p["wq"], p["wk"], p["wv"]], axis=1)   # [H, 3H]
    bqkv = jnp.concatenate([p["bq"], p["bk"], p["bv"]], axis=1)   # [1, 3H]
    wc = jnp.zeros((H, LANE_OUT), jnp.float32).at[:, :N_CLASSES].set(p["wc"])
    bc = jnp.zeros((1, LANE_OUT), jnp.float32).at[:, :N_CLASSES].set(p["bc"])

    return jnp.concatenate([
        ln,
        pack(wqkv, bqkv, WO_OFF - QKV_OFF),
        pack(p["wo"], p["bo"], W1_OFF - WO_OFF),
        pack(p["w1"], p["b1"], W2_OFF - W1_OFF),
        pack(p["w2"], p["b2"], WP_OFF - W2_OFF),
        pack(p["wp"], p["bp"], WC_OFF - WP_OFF),
        pack(wc, bc, SLAB_ROWS - WC_OFF),
    ], axis=0)                                              # [280, 128]


@jax.jit
def transformer_classifier_forward(params, input_ids, attention_mask,
                                   token_type_ids):
    tok = jnp.stack([input_ids.reshape(BS), token_type_ids.reshape(BS)],
                    axis=1).astype(jnp.int32)               # [BS, 2]
    mask = attention_mask.astype(jnp.int32)                 # [B, S]
    emb_tab = _pack_embedding_table(params)
    w_slab = _pack_weight_slab(params)

    vmem = pl.BlockSpec(memory_space=pltpu.MemorySpace.VMEM)
    out = pl.pallas_call(
        transformer_kernel,
        out_shape=jax.ShapeDtypeStruct((BS, LANE_OUT), jnp.float32),
        in_specs=[vmem, vmem, vmem, vmem],
        out_specs=vmem,
    )(tok, mask, emb_tab, w_slab)

    # CLS rows are rows b*S; classes live in lanes 0..N_CLASSES-1.
    return out.reshape(B, S, LANE_OUT)[:, 0, :N_CLASSES]


# ------------------------- pure-JAX reference --------------------------------
def reference_forward(params, input_ids, attention_mask, token_type_ids):
    pos_ids = jnp.arange(S, dtype=jnp.int32)
    emb = (params["word_emb"][input_ids]
           + params["pos_emb"][pos_ids][None, :, :]
           + params["type_emb"][token_type_ids]).astype(jnp.float32)
    mask = attention_mask.astype(jnp.float32)                   # [B, S]

    h = _layer_norm(emb, params["ln_e_g"], params["ln_e_b"])
    q = h @ params["wq"] + params["bq"]
    k = h @ params["wk"] + params["bk"]
    v = h @ params["wv"] + params["bv"]

    def split(t):
        return t.reshape(B, S, N_HEADS, D_HEAD)

    qh, kh, vh = split(q), split(k), split(v)
    scores = jnp.einsum("bqnd,bknd->bnqk", qh, kh) / math.sqrt(D_HEAD)
    scores = scores + ((1.0 - mask) * -1e9)[:, None, None, :]
    p = jax.nn.softmax(scores, axis=-1)
    ctx = jnp.einsum("bnqk,bknd->bqnd", p, vh).reshape(B, S, H)

    attn_out = ctx @ params["wo"] + params["bo"]
    h1 = _layer_norm(h + attn_out, params["ln1_g"], params["ln1_b"])
    ffn = _gelu(h1 @ params["w1"] + params["b1"]) @ params["w2"] + params["b2"]
    h2 = _layer_norm(h1 + ffn, params["ln2_g"], params["ln2_b"])

    pooled = jnp.tanh(h2[:, 0, :] @ params["wp"] + params["bp"])
    return pooled @ params["wc"] + params["bc"]


# ------------------------------ param init -----------------------------------
def init_params(key):
    def nrm(k, shape):
        return 0.02 * jax.random.normal(k, shape, dtype=jnp.float32)

    keys = jax.random.split(key, 20)
    return {
        "word_emb": nrm(keys[0], (VOCAB, H)),
        "pos_emb":  nrm(keys[1], (MAX_POS, H)),
        "type_emb": nrm(keys[2], (TYPE_VOCAB, H)),
        "ln_e_g": jnp.ones((1, H), jnp.float32),
        "ln_e_b": jnp.zeros((1, H), jnp.float32),
        "wq": nrm(keys[3], (H, H)), "bq": nrm(keys[4], (1, H)),
        "wk": nrm(keys[5], (H, H)), "bk": nrm(keys[6], (1, H)),
        "wv": nrm(keys[7], (H, H)), "bv": nrm(keys[8], (1, H)),
        "wo": nrm(keys[9], (H, H)), "bo": nrm(keys[10], (1, H)),
        "ln1_g": jnp.ones((1, H), jnp.float32),
        "ln1_b": jnp.zeros((1, H), jnp.float32),
        "w1": nrm(keys[11], (H, INTER)), "b1": nrm(keys[12], (1, INTER)),
        "w2": nrm(keys[13], (INTER, H)), "b2": nrm(keys[14], (1, H)),
        "ln2_g": jnp.ones((1, H), jnp.float32),
        "ln2_b": jnp.zeros((1, H), jnp.float32),
        "wp": nrm(keys[15], (H, H)), "bp": nrm(keys[16], (1, H)),
        "wc": nrm(keys[17], (H, N_CLASSES)), "bc": nrm(keys[18], (1, N_CLASSES)),
    }


# --------------------------------- main ---------------------------------------
if __name__ == "__main__":
    key = jax.random.PRNGKey(0)
    pkey, ikey, tkey = jax.random.split(key, 3)

    params = init_params(pkey)

    input_ids = jax.random.randint(ikey, (B, S), 0, VOCAB, dtype=jnp.int32)
    token_type_ids = jax.random.randint(tkey, (B, S), 0, TYPE_VOCAB,
                                        dtype=jnp.int32)
    # Second sequence has 3 trailing pad positions.
    attention_mask = jnp.array(
        [[1, 1, 1, 1, 1, 1, 1, 1],
         [1, 1, 1, 1, 1, 0, 0, 0]], dtype=jnp.int32)

    logits = transformer_classifier_forward(params, input_ids,
                                            attention_mask, token_type_ids)
    logits = jax.block_until_ready(logits)

    ref = reference_forward(params, input_ids, attention_mask, token_type_ids)
    assert logits.shape == (B, N_CLASSES)
    assert jnp.allclose(logits, ref, atol=1e-4, rtol=1e-4), (logits, ref)

    print("KERNEL_OK")
</pallas_src>

<mosaic_0001>
module attributes {stable_mosaic.version = 11 : i64} {
  func.func @transformer_kernel(%arg0: memref<16x2xi32, #tpu.memory_space<vmem>>, %arg1: memref<2x8xi32, #tpu.memory_space<vmem>>, %arg2: memref<256x32xf32, #tpu.memory_space<vmem>>, %arg3: memref<280x128xf32, #tpu.memory_space<vmem>>, %arg4: memref<16x128xf32, #tpu.memory_space<vmem>>) attributes {dimension_semantics = [], scalar_prefetch = 0 : i64, scratch_operands = 0 : i64, tpu.core_type = #tpu.core_type<tc>} {
    %c0 = arith.constant 0 : index
    %c0_0 = arith.constant 0 : index
    %0 = vector.load %arg0[%c0, %c0_0] : memref<16x2xi32, #tpu.memory_space<vmem>>, vector<16x2xi32>
    %1 = vector.extract_strided_slice %0 {offsets = [0, 0], sizes = [16, 1], strides = [1, 1]} : vector<16x2xi32> to vector<16x1xi32>
    %2 = vector.extract_strided_slice %0 {offsets = [0, 1], sizes = [16, 1], strides = [1, 1]} : vector<16x2xi32> to vector<16x1xi32>
    %3 = tpu.iota {dimensions = array<i32: 1>} : vector<16x256xi32>
    %4 = tpu.iota {dimensions = array<i32: 0>} : vector<16x1xi32>
    %c7_i32 = arith.constant 7 : i32
    %5 = vector.broadcast %c7_i32 : i32 to vector<16x1xi32>
    %6 = arith.andi %4, %5 : vector<16x1xi32>
    %7 = vector.broadcast %1 : vector<16x1xi32> to vector<16x256xi32>
    %8 = arith.cmpi eq, %3, %7 : vector<16x256xi32>
    %c128_i32 = arith.constant 128 : i32
    %9 = vector.broadcast %c128_i32 : i32 to vector<16x1xi32>
    %10 = arith.addi %9, %6 : vector<16x1xi32>
    %11 = vector.broadcast %10 : vector<16x1xi32> to vector<16x256xi32>
    %12 = arith.cmpi eq, %3, %11 : vector<16x256xi32>
    %13 = arith.ori %8, %12 : vector<16x256xi1>
    %c144_i32 = arith.constant 144 : i32
    %14 = vector.broadcast %c144_i32 : i32 to vector<16x1xi32>
    %15 = arith.addi %14, %2 : vector<16x1xi32>
    %16 = vector.broadcast %15 : vector<16x1xi32> to vector<16x256xi32>
    %17 = arith.cmpi eq, %3, %16 : vector<16x256xi32>
    %18 = arith.ori %13, %17 : vector<16x256xi1>
    %19 = arith.extui %18 : vector<16x256xi1> to vector<16x256xi32>
    %20 = arith.sitofp %19 : vector<16x256xi32> to vector<16x256xf32>
    %c0_1 = arith.constant 0 : index
    %c0_2 = arith.constant 0 : index
    %21 = vector.load %arg2[%c0_1, %c0_2] : memref<256x32xf32, #tpu.memory_space<vmem>>, vector<256x32xf32>
    %cst = arith.constant dense<0.000000e+00> : vector<16x32xf32>
    %22 = tpu.matmul %20, %21, %cst {dimension_numbers = #tpu.dot_dimension_numbers<[1], [0], [0], [1], [0, 0, 1, 1], [], []>} : vector<16x256xf32>, vector<256x32xf32>, vector<16x32xf32> -> vector<16x32xf32>
    %c0_3 = arith.constant 0 : index
    %c0_4 = arith.constant 0 : index
    %23 = vector.load %arg3[%c0_3, %c0_4] : memref<280x128xf32, #tpu.memory_space<vmem>>, vector<1x32xf32>
    %c1 = arith.constant 1 : index
    %c0_5 = arith.constant 0 : index
    %24 = vector.load %arg3[%c1, %c0_5] : memref<280x128xf32, #tpu.memory_space<vmem>>, vector<1x32xf32>
    %cst_6 = arith.constant dense<0.000000e+00> : vector<16xf32>
    %25 = vector.multi_reduction <add>, %22, %cst_6 [1] : vector<16x32xf32> to vector<16xf32>
    %26 = vector.shape_cast %25 : vector<16xf32> to vector<16x1xf32>
    %cst_7 = arith.constant 3.200000e+01 : f32
    %27 = vector.broadcast %cst_7 : f32 to vector<16x1xf32>
    %28 = arith.divf %26, %27 : vector<16x1xf32>
    %29 = vector.broadcast %28 : vector<16x1xf32> to vector<16x32xf32>
    %30 = arith.subf %22, %29 : vector<16x32xf32>
    %31 = arith.mulf %30, %30 : vector<16x32xf32>
    %cst_8 = arith.constant dense<0.000000e+00> : vector<16xf32>
    %32 = vector.multi_reduction <add>, %31, %cst_8 [1] : vector<16x32xf32> to vector<16xf32>
    %33 = vector.shape_cast %32 : vector<16xf32> to vector<16x1xf32>
    %cst_9 = arith.constant 3.200000e+01 : f32
    %34 = vector.broadcast %cst_9 : f32 to vector<16x1xf32>
    %35 = arith.divf %33, %34 : vector<16x1xf32>
    %36 = vector.broadcast %28 : vector<16x1xf32> to vector<16x32xf32>
    %37 = arith.subf %22, %36 : vector<16x32xf32>
    %cst_10 = arith.constant 9.99999996E-13 : f32
    %38 = vector.broadcast %cst_10 : f32 to vector<16x1xf32>
    %39 = arith.addf %35, %38 : vector<16x1xf32>
    %40 = math.rsqrt %39 : vector<16x1xf32>
    %41 = vector.broadcast %40 : vector<16x1xf32> to vector<16x32xf32>
    %42 = arith.mulf %37, %41 : vector<16x32xf32>
    %43 = vector.broadcast %23 : vector<1x32xf32> to vector<16x32xf32>
    %44 = arith.mulf %42, %43 : vector<16x32xf32>
    %45 = vector.broadcast %24 : vector<1x32xf32> to vector<16x32xf32>
    %46 = arith.addf %44, %45 : vector<16x32xf32>
    %c8 = arith.constant 8 : index
    %c0_11 = arith.constant 0 : index
    %47 = vector.load %arg3[%c8, %c0_11] : memref<280x128xf32, #tpu.memory_space<vmem>>, vector<32x96xf32>
    %cst_12 = arith.constant dense<0.000000e+00> : vector<16x96xf32>
    %48 = tpu.matmul %46, %47, %cst_12 {dimension_numbers = #tpu.dot_dimension_numbers<[1], [0], [0], [1], [0, 0, 1, 1], [], []>} : vector<16x32xf32>, vector<32x96xf32>, vector<16x96xf32> -> vector<16x96xf32>
    %c40 = arith.constant 40 : index
    %c0_13 = arith.constant 0 : index
    %49 = vector.load %arg3[%c40, %c0_13] : memref<280x128xf32, #tpu.memory_space<vmem>>, vector<1x96xf32>
    %50 = vector.broadcast %49 : vector<1x96xf32> to vector<16x96xf32>
    %51 = arith.addf %48, %50 : vector<16x96xf32>
    %52 = vector.extract_strided_slice %51 {offsets = [0, 0], sizes = [16, 32], strides = [1, 1]} : vector<16x96xf32> to vector<16x32xf32>
    %53 = vector.shape_cast %52 : vector<16x32xf32> to vector<2x8x32xf32>
    %54 = vector.extract_strided_slice %51 {offsets = [0, 32], sizes = [16, 32], strides = [1, 1]} : vector<16x96xf32> to vector<16x32xf32>
    %55 = vector.shape_cast %54 : vector<16x32xf32> to vector<2x8x32xf32>
    %56 = vector.extract_strided_slice %51 {offsets = [0, 64], sizes = [16, 32], strides = [1, 1]} : vector<16x96xf32> to vector<16x32xf32>
    %57 = vector.shape_cast %56 : vector<16x32xf32> to vector<2x8x32xf32>
    %58 = vector.extract_strided_slice %53 {offsets = [0, 0, 0], sizes = [2, 8, 8], strides = [1, 1, 1]} : vector<2x8x32xf32> to vector<2x8x8xf32>
    %59 = vector.extract_strided_slice %53 {offsets = [0, 0, 8], sizes = [2, 8, 8], strides = [1, 1, 1]} : vector<2x8x32xf32> to vector<2x8x8xf32>
    %60 = vector.extract_strided_slice %53 {offsets = [0, 0, 16], sizes = [2, 8, 8], strides = [1, 1, 1]} : vector<2x8x32xf32> to vector<2x8x8xf32>
    %61 = vector.extract_strided_slice %53 {offsets = [0, 0, 24], sizes = [2, 8, 8], strides = [1, 1, 1]} : vector<2x8x32xf32> to vector<2x8x8xf32>
    %62 = tpu.concatenate %58, %59, %60, %61 in 0 : vector<2x8x8xf32>, vector<2x8x8xf32>, vector<2x8x8xf32>, vector<2x8x8xf32> -> vector<8x8x8xf32>
    %63 = vector.extract_strided_slice %55 {offsets = [0, 0, 0], sizes = [2, 8, 8], strides = [1, 1, 1]} : vector<2x8x32xf32> to vector<2x8x8xf32>
    %64 = vector.extract_strided_slice %55 {offsets = [0, 0, 8], sizes = [2, 8, 8], strides = [1, 1, 1]} : vector<2x8x32xf32> to vector<2x8x8xf32>
    %65 = vector.extract_strided_slice %55 {offsets = [0, 0, 16], sizes = [2, 8, 8], strides = [1, 1, 1]} : vector<2x8x32xf32> to vector<2x8x8xf32>
    %66 = vector.extract_strided_slice %55 {offsets = [0, 0, 24], sizes = [2, 8, 8], strides = [1, 1, 1]} : vector<2x8x32xf32> to vector<2x8x8xf32>
    %67 = tpu.concatenate %63, %64, %65, %66 in 0 : vector<2x8x8xf32>, vector<2x8x8xf32>, vector<2x8x8xf32>, vector<2x8x8xf32> -> vector<8x8x8xf32>
    %68 = vector.extract_strided_slice %57 {offsets = [0, 0, 0], sizes = [2, 8, 8], strides = [1, 1, 1]} : vector<2x8x32xf32> to vector<2x8x8xf32>
    %69 = vector.extract_strided_slice %57 {offsets = [0, 0, 8], sizes = [2, 8, 8], strides = [1, 1, 1]} : vector<2x8x32xf32> to vector<2x8x8xf32>
    %70 = vector.extract_strided_slice %57 {offsets = [0, 0, 16], sizes = [2, 8, 8], strides = [1, 1, 1]} : vector<2x8x32xf32> to vector<2x8x8xf32>
    %71 = vector.extract_strided_slice %57 {offsets = [0, 0, 24], sizes = [2, 8, 8], strides = [1, 1, 1]} : vector<2x8x32xf32> to vector<2x8x8xf32>
    %72 = tpu.concatenate %68, %69, %70, %71 in 0 : vector<2x8x8xf32>, vector<2x8x8xf32>, vector<2x8x8xf32>, vector<2x8x8xf32> -> vector<8x8x8xf32>
    %c0_14 = arith.constant 0 : index
    %c0_15 = arith.constant 0 : index
    %73 = vector.load %arg1[%c0_14, %c0_15] : memref<2x8xi32, #tpu.memory_space<vmem>>, vector<2x8xi32>
    %74 = arith.sitofp %73 : vector<2x8xi32> to vector<2x8xf32>
    %cst_16 = arith.constant 1.000000e+00 : f32
    %75 = vector.broadcast %cst_16 : f32 to vector<2x8xf32>
    %76 = arith.subf %75, %74 : vector<2x8xf32>
    %cst_17 = arith.constant -1.000000e+09 : f32
    %77 = vector.broadcast %cst_17 : f32 to vector<2x8xf32>
    %78 = arith.mulf %76, %77 : vector<2x8xf32>
    %79 = tpu.concatenate %78, %78, %78, %78 in 0 : vector<2x8xf32>, vector<2x8xf32>, vector<2x8xf32>, vector<2x8xf32> -> vector<8x8xf32>
    %80 = vector.shape_cast %79 : vector<8x8xf32> to vector<8x1x8xf32>
    %81 = vector.broadcast %80 : vector<8x1x8xf32> to vector<8x8x8xf32>
    "tpu.trace_start"() <{level = 10 : i32, message = "zqd,zkd->zqk"}> : () -> ()
    %cst_18 = arith.constant dense<0.000000e+00> : vector<8x8x8xf32>
    %82 = tpu.matmul %62, %67, %cst_18 {dimension_numbers = #tpu.dot_dimension_numbers<[2], [2], [1], [1], [0, 0, 0, 1, 1, 1], [0], [0]>} : vector<8x8x8xf32>, vector<8x8x8xf32>, vector<8x8x8xf32> -> vector<8x8x8xf32>
    "tpu.trace_stop"() : () -> ()
    %cst_19 = arith.constant 0.353553385 : f32
    %83 = vector.broadcast %cst_19 : f32 to vector<8x8x8xf32>
    %84 = arith.mulf %82, %83 : vector<8x8x8xf32>
    %85 = arith.addf %84, %81 : vector<8x8x8xf32>
    %cst_20 = arith.constant dense<0xFF800000> : vector<8x8xf32>
    %86 = vector.multi_reduction <maximumf>, %85, %cst_20 [2] : vector<8x8x8xf32> to vector<8x8xf32>
    %87 = vector.shape_cast %86 : vector<8x8xf32> to vector<8x8x1xf32>
    %88 = vector.broadcast %87 : vector<8x8x1xf32> to vector<8x8x8xf32>
    %89 = arith.subf %85, %88 : vector<8x8x8xf32>
    %90 = math.exp %89 : vector<8x8x8xf32>
    %cst_21 = arith.constant dense<0.000000e+00> : vector<8x8xf32>
    %91 = vector.multi_reduction <add>, %90, %cst_21 [2] : vector<8x8x8xf32> to vector<8x8xf32>
    %92 = vector.shape_cast %91 : vector<8x8xf32> to vector<8x8x1xf32>
    %93 = vector.broadcast %92 : vector<8x8x1xf32> to vector<8x8x8xf32>
    %94 = arith.divf %90, %93 : vector<8x8x8xf32>
    "tpu.trace_start"() <{level = 10 : i32, message = "zqk,zkd->zqd"}> : () -> ()
    %cst_22 = arith.constant dense<0.000000e+00> : vector<8x8x8xf32>
    %95 = tpu.matmul %94, %72, %cst_22 {dimension_numbers = #tpu.dot_dimension_numbers<[2], [1], [1], [2], [0, 0, 0, 1, 1, 2], [0], [0]>} : vector<8x8x8xf32>, vector<8x8x8xf32>, vector<8x8x8xf32> -> vector<8x8x8xf32>
    "tpu.trace_stop"() : () -> ()
    %96 = vector.extract_strided_slice %95 {offsets = [0, 0, 0], sizes = [2, 8, 8], strides = [1, 1, 1]} : vector<8x8x8xf32> to vector<2x8x8xf32>
    %97 = vector.extract_strided_slice %95 {offsets = [2, 0, 0], sizes = [2, 8, 8], strides = [1, 1, 1]} : vector<8x8x8xf32> to vector<2x8x8xf32>
    %98 = vector.extract_strided_slice %95 {offsets = [4, 0, 0], sizes = [2, 8, 8], strides = [1, 1, 1]} : vector<8x8x8xf32> to vector<2x8x8xf32>
    %99 = vector.extract_strided_slice %95 {offsets = [6, 0, 0], sizes = [2, 8, 8], strides = [1, 1, 1]} : vector<8x8x8xf32> to vector<2x8x8xf32>
    %100 = tpu.concatenate %96, %97, %98, %99 in 2 : vector<2x8x8xf32>, vector<2x8x8xf32>, vector<2x8x8xf32>, vector<2x8x8xf32> -> vector<2x8x32xf32>
    %101 = vector.shape_cast %100 : vector<2x8x32xf32> to vector<16x32xf32>
    %c48 = arith.constant 48 : index
    %c0_23 = arith.constant 0 : index
    %102 = vector.load %arg3[%c48, %c0_23] : memref<280x128xf32, #tpu.memory_space<vmem>>, vector<32x32xf32>
    %cst_24 = arith.constant dense<0.000000e+00> : vector<16x32xf32>
    %103 = tpu.matmul %101, %102, %cst_24 {dimension_numbers = #tpu.dot_dimension_numbers<[1], [0], [0], [1], [0, 0, 1, 1], [], []>} : vector<16x32xf32>, vector<32x32xf32>, vector<16x32xf32> -> vector<16x32xf32>
    %c80 = arith.constant 80 : index
    %c0_25 = arith.constant 0 : index
    %104 = vector.load %arg3[%c80, %c0_25] : memref<280x128xf32, #tpu.memory_space<vmem>>, vector<1x32xf32>
    %105 = vector.broadcast %104 : vector<1x32xf32> to vector<16x32xf32>
    %106 = arith.addf %103, %105 : vector<16x32xf32>
    %107 = arith.addf %46, %106 : vector<16x32xf32>
    %c2 = arith.constant 2 : index
    %c0_26 = arith.constant 0 : index
    %108 = vector.load %arg3[%c2, %c0_26] : memref<280x128xf32, #tpu.memory_space<vmem>>, vector<1x32xf32>
    %c3 = arith.constant 3 : index
    %c0_27 = arith.constant 0 : index
    %109 = vector.load %arg3[%c3, %c0_27] : memref<280x128xf32, #tpu.memory_space<vmem>>, vector<1x32xf32>
    %cst_28 = arith.constant dense<0.000000e+00> : vector<16xf32>
    %110 = vector.multi_reduction <add>, %107, %cst_28 [1] : vector<16x32xf32> to vector<16xf32>
    %111 = vector.shape_cast %110 : vector<16xf32> to vector<16x1xf32>
    %cst_29 = arith.constant 3.200000e+01 : f32
    %112 = vector.broadcast %cst_29 : f32 to vector<16x1xf32>
    %113 = arith.divf %111, %112 : vector<16x1xf32>
    %114 = vector.broadcast %113 : vector<16x1xf32> to vector<16x32xf32>
    %115 = arith.subf %107, %114 : vector<16x32xf32>
    %116 = arith.mulf %115, %115 : vector<16x32xf32>
    %cst_30 = arith.constant dense<0.000000e+00> : vector<16xf32>
    %117 = vector.multi_reduction <add>, %116, %cst_30 [1] : vector<16x32xf32> to vector<16xf32>
    %118 = vector.shape_cast %117 : vector<16xf32> to vector<16x1xf32>
    %cst_31 = arith.constant 3.200000e+01 : f32
    %119 = vector.broadcast %cst_31 : f32 to vector<16x1xf32>
    %120 = arith.divf %118, %119 : vector<16x1xf32>
    %121 = vector.broadcast %113 : vector<16x1xf32> to vector<16x32xf32>
    %122 = arith.subf %107, %121 : vector<16x32xf32>
    %cst_32 = arith.constant 9.99999996E-13 : f32
    %123 = vector.broadcast %cst_32 : f32 to vector<16x1xf32>
    %124 = arith.addf %120, %123 : vector<16x1xf32>
    %125 = math.rsqrt %124 : vector<16x1xf32>
    %126 = vector.broadcast %125 : vector<16x1xf32> to vector<16x32xf32>
    %127 = arith.mulf %122, %126 : vector<16x32xf32>
    %128 = vector.broadcast %108 : vector<1x32xf32> to vector<16x32xf32>
    %129 = arith.mulf %127, %128 : vector<16x32xf32>
    %130 = vector.broadcast %109 : vector<1x32xf32> to vector<16x32xf32>
    %131 = arith.addf %129, %130 : vector<16x32xf32>
    %c88 = arith.constant 88 : index
    %c0_33 = arith.constant 0 : index
    %132 = vector.load %arg3[%c88, %c0_33] : memref<280x128xf32, #tpu.memory_space<vmem>>, vector<32x64xf32>
    %cst_34 = arith.constant dense<0.000000e+00> : vector<16x64xf32>
    %133 = tpu.matmul %131, %132, %cst_34 {dimension_numbers = #tpu.dot_dimension_numbers<[1], [0], [0], [1], [0, 0, 1, 1], [], []>} : vector<16x32xf32>, vector<32x64xf32>, vector<16x64xf32> -> vector<16x64xf32>
    %c120 = arith.constant 120 : index
    %c0_35 = arith.constant 0 : index
    %134 = vector.load %arg3[%c120, %c0_35] : memref<280x128xf32, #tpu.memory_space<vmem>>, vector<1x64xf32>
    %135 = vector.broadcast %134 : vector<1x64xf32> to vector<16x64xf32>
    %136 = arith.addf %133, %135 : vector<16x64xf32>
    %cst_36 = arith.constant 5.000000e-01 : f32
    %137 = vector.broadcast %cst_36 : f32 to vector<16x64xf32>
    %138 = arith.mulf %137, %136 : vector<16x64xf32>
    %cst_37 = arith.constant 4.471500e-02 : f32
    %139 = vector.broadcast %cst_37 : f32 to vector<16x64xf32>
    %140 = arith.mulf %139, %136 : vector<16x64xf32>
    %141 = arith.mulf %140, %136 : vector<16x64xf32>
    %142 = arith.mulf %141, %136 : vector<16x64xf32>
    %143 = arith.addf %136, %142 : vector<16x64xf32>
    %cst_38 = arith.constant 0.797884583 : f32
    %144 = vector.broadcast %cst_38 : f32 to vector<16x64xf32>
    %145 = arith.mulf %144, %143 : vector<16x64xf32>
    %146 = math.tanh %145 : vector<16x64xf32>
    %cst_39 = arith.constant 1.000000e+00 : f32
    %147 = vector.broadcast %cst_39 : f32 to vector<16x64xf32>
    %148 = arith.addf %147, %146 : vector<16x64xf32>
    %149 = arith.mulf %138, %148 : vector<16x64xf32>
    %c128 = arith.constant 128 : index
    %c0_40 = arith.constant 0 : index
    %150 = vector.load %arg3[%c128, %c0_40] : memref<280x128xf32, #tpu.memory_space<vmem>>, vector<64x32xf32>
    %cst_41 = arith.constant dense<0.000000e+00> : vector<16x32xf32>
    %151 = tpu.matmul %149, %150, %cst_41 {dimension_numbers = #tpu.dot_dimension_numbers<[1], [0], [0], [1], [0, 0, 1, 1], [], []>} : vector<16x64xf32>, vector<64x32xf32>, vector<16x32xf32> -> vector<16x32xf32>
    %c192 = arith.constant 192 : index
    %c0_42 = arith.constant 0 : index
    %152 = vector.load %arg3[%c192, %c0_42] : memref<280x128xf32, #tpu.memory_space<vmem>>, vector<1x32xf32>
    %153 = vector.broadcast %152 : vector<1x32xf32> to vector<16x32xf32>
    %154 = arith.addf %151, %153 : vector<16x32xf32>
    %155 = arith.addf %131, %154 : vector<16x32xf32>
    %c4 = arith.constant 4 : index
    %c0_43 = arith.constant 0 : index
    %156 = vector.load %arg3[%c4, %c0_43] : memref<280x128xf32, #tpu.memory_space<vmem>>, vector<1x32xf32>
    %c5 = arith.constant 5 : index
    %c0_44 = arith.constant 0 : index
    %157 = vector.load %arg3[%c5, %c0_44] : memref<280x128xf32, #tpu.memory_space<vmem>>, vector<1x32xf32>
    %cst_45 = arith.constant dense<0.000000e+00> : vector<16xf32>
    %158 = vector.multi_reduction <add>, %155, %cst_45 [1] : vector<16x32xf32> to vector<16xf32>
    %159 = vector.shape_cast %158 : vector<16xf32> to vector<16x1xf32>
    %cst_46 = arith.constant 3.200000e+01 : f32
    %160 = vector.broadcast %cst_46 : f32 to vector<16x1xf32>
    %161 = arith.divf %159, %160 : vector<16x1xf32>
    %162 = vector.broadcast %161 : vector<16x1xf32> to vector<16x32xf32>
    %163 = arith.subf %155, %162 : vector<16x32xf32>
    %164 = arith.mulf %163, %163 : vector<16x32xf32>
    %cst_47 = arith.constant dense<0.000000e+00> : vector<16xf32>
    %165 = vector.multi_reduction <add>, %164, %cst_47 [1] : vector<16x32xf32> to vector<16xf32>
    %166 = vector.shape_cast %165 : vector<16xf32> to vector<16x1xf32>
    %cst_48 = arith.constant 3.200000e+01 : f32
    %167 = vector.broadcast %cst_48 : f32 to vector<16x1xf32>
    %168 = arith.divf %166, %167 : vector<16x1xf32>
    %169 = vector.broadcast %161 : vector<16x1xf32> to vector<16x32xf32>
    %170 = arith.subf %155, %169 : vector<16x32xf32>
    %cst_49 = arith.constant 9.99999996E-13 : f32
    %171 = vector.broadcast %cst_49 : f32 to vector<16x1xf32>
    %172 = arith.addf %168, %171 : vector<16x1xf32>
    %173 = math.rsqrt %172 : vector<16x1xf32>
    %174 = vector.broadcast %173 : vector<16x1xf32> to vector<16x32xf32>
    %175 = arith.mulf %170, %174 : vector<16x32xf32>
    %176 = vector.broadcast %156 : vector<1x32xf32> to vector<16x32xf32>
    %177 = arith.mulf %175, %176 : vector<16x32xf32>
    %178 = vector.broadcast %157 : vector<1x32xf32> to vector<16x32xf32>
    %179 = arith.addf %177, %178 : vector<16x32xf32>
    %c200 = arith.constant 200 : index
    %c0_50 = arith.constant 0 : index
    %180 = vector.load %arg3[%c200, %c0_50] : memref<280x128xf32, #tpu.memory_space<vmem>>, vector<32x32xf32>
    %cst_51 = arith.constant dense<0.000000e+00> : vector<16x32xf32>
    %181 = tpu.matmul %179, %180, %cst_51 {dimension_numbers = #tpu.dot_dimension_numbers<[1], [0], [0], [1], [0, 0, 1, 1], [], []>} : vector<16x32xf32>, vector<32x32xf32>, vector<16x32xf32> -> vector<16x32xf32>
    %c232 = arith.constant 232 : index
    %c0_52 = arith.constant 0 : index
    %182 = vector.load %arg3[%c232, %c0_52] : memref<280x128xf32, #tpu.memory_space<vmem>>, vector<1x32xf32>
    %183 = vector.broadcast %182 : vector<1x32xf32> to vector<16x32xf32>
    %184 = arith.addf %181, %183 : vector<16x32xf32>
    %185 = math.tanh %184 : vector<16x32xf32>
    %c240 = arith.constant 240 : index
    %c0_53 = arith.constant 0 : index
    %186 = vector.load %arg3[%c240, %c0_53] : memref<280x128xf32, #tpu.memory_space<vmem>>, vector<32x128xf32>
    %cst_54 = arith.constant dense<0.000000e+00> : vector<16x128xf32>
    %187 = tpu.matmul %185, %186, %cst_54 {dimension_numbers = #tpu.dot_dimension_numbers<[1], [0], [0], [1], [0, 0, 1, 1], [], []>} : vector<16x32xf32>, vector<32x128xf32>, vector<16x128xf32> -> vector<16x128xf32>
    %c272 = arith.constant 272 : index
    %c0_55 = arith.constant 0 : index
    %188 = vector.load %arg3[%c272, %c0_55] : memref<280x128xf32, #tpu.memory_space<vmem>>, vector<1x128xf32>
    %189 = vector.broadcast %188 : vector<1x128xf32> to vector<16x128xf32>
    %190 = arith.addf %187, %189 : vector<16x128xf32>
    %c0_56 = arith.constant 0 : index
    %c0_57 = arith.constant 0 : index
    %191 = vector.load %arg4[%c0_56, %c0_57] : memref<16x128xf32, #tpu.memory_space<vmem>>, vector<16x128xf32>
    tpu.vector_store %arg4[%c0_56, %c0_57], %190 {strides = array<i32>} : memref<16x128xf32, #tpu.memory_space<vmem>>, vector<16x128xf32>,
    return
  }
}

</mosaic_0001>

<llo_original>
// kernel: transformer_classifier_forward.1
$region0: #{transformer_classifier_forward.1}
  #allocation0 [shape = 'u32[]', space=smem, size = 0x4, offset = 0x4, fixed_abs, tag = 'smem constant byte address 0x4 - core index']
  #allocation1 [shape = 'u32[144,128]{1,0:T(1,128)}', space=vmem, size = 0x12000, scoped, tag = 'internal scratch']
  %s0 = inlined_call_operand.vmem [shape: s32[16,2], index: 0, kind: input, shape index: {}]
  %s1 = inlined_call_operand.vmem [shape: s32[2,8], index: 1, kind: input, shape index: {}]
  %s2 = inlined_call_operand.vmem [shape: f32[256,32], index: 2, kind: input, shape index: {}]
  %s3 = inlined_call_operand.vmem [shape: f32[280,128], index: 3, kind: input, shape index: {}]
  %s4 = inlined_call_operand.vmem [shape: f32[16,128], index: 4, kind: output, shape index: {}]
  %s5 = sld [smem:[#allocation0]]
  $region26: #{transformer_classifier_forward.1} parent=0
    _
  %s7 = ssub.s32 1, %s5
  %s8 = scalar_select 0, %s7, %s5
  // Predicated region
  $region2: #{transformer_classifier_forward.1} parent=0 // pred_check
    _
  $region3: #{transformer_classifier_forward.1} parent=0 // pred_check_branch
    %10 = sbr.rel (0) target = $region5
  $region4: #{transformer_classifier_forward.1} parent=0 // pred_region
    _
  $region5: #{transformer_classifier_forward.1} parent=0 // pred_fallthru
    _
  // Predicated region
  $region6: #{transformer_classifier_forward.1} parent=0 // pred_check
    _
  $region7: #{transformer_classifier_forward.1} parent=0 // pred_check_branch
    %12 = sbr.rel (0) target = $region9
  $region8: #{transformer_classifier_forward.1} parent=0 // pred_region
    _
  $region9: #{transformer_classifier_forward.1} parent=0 // pred_fallthru
    _
  // Predicated region
  $region10: #{transformer_classifier_forward.1} parent=0 // pred_check
    _
  $region11: #{transformer_classifier_forward.1} parent=0 // pred_check_branch
    %14 = sbr.rel (0) target = $region13
  $region12: #{transformer_classifier_forward.1} parent=0 // pred_region
    _
  $region13: #{transformer_classifier_forward.1} parent=0 // pred_fallthru
    _
  // Predicated region
  $region14: #{transformer_classifier_forward.1} parent=0 // pred_check
    _
  $region15: #{transformer_classifier_forward.1} parent=0 // pred_check_branch
    %16 = sbr.rel (0) target = $region17
  $region16: #{transformer_classifier_forward.1} parent=0 // pred_region
    _
  $region17: #{transformer_classifier_forward.1} parent=0 // pred_fallthru
    _
  %v17 = vld [vmem:[%s0] sm:$0xff]
  %v18 = vld [vmem:[%s0 + $0x8] sm:$0xff]
  %v19 = vlaneseq
  %v20 = vand.u32 %v19, 127
  %v21 = vadd.s32 %v20, 128
  %v22 = vlaneseq
  %v23 = vshrl.u32 %v22, 7
  %v24 = vadd.s32 %v23, 8
  %v25 = vand.u32 %v23, 7
  %v26 = vand.u32 %v24, 7
  %27 = vset.pattern.permute.xlu0 0
  %28 = vperm.xlu0 %27, %v17
  %v29 = vpop.permute.xlu0 %28
  %30 = vset.pattern.permute.xlu0 0
  %31 = vperm.xlu0 %30, %v18
  %v32 = vpop.permute.xlu0 %31
  %vm33 = vcmp.eq.s32.totalorder %v20, %v29
  %vm34 = vcmp.eq.s32.totalorder %v21, %v29
  %vm35 = vcmp.eq.s32.totalorder %v20, %v32
  %vm36 = vcmp.eq.s32.totalorder %v21, %v32
  %v37 = vadd.s32 %v25, 128
  %v38 = vadd.s32 %v26, 128
  %vm39 = vcmp.eq.s32.totalorder %v20, %v37
  %vm40 = vcmp.eq.s32.totalorder %v21, %v37
  %vm41 = vcmp.eq.s32.totalorder %v20, %v38
  %vm42 = vcmp.eq.s32.totalorder %v21, %v38
  %vm43 = vmor %vm33, %vm39
  %vm44 = vmor %vm34, %vm40
  %vm45 = vmor %vm35, %vm41
  %vm46 = vmor %vm36, %vm42
  %v47 = vadd.s32 %v17, 144
  %v48 = vadd.s32 %v18, 144
  %49 = vset.pattern.permute.xlu0 1
  %50 = vperm.xlu0 %49, %v47
  %v51 = vpop.permute.xlu0 %50
  %52 = vset.pattern.permute.xlu0 1
  %53 = vperm.xlu0 %52, %v48
  %v54 = vpop.permute.xlu0 %53
  %vm55 = vcmp.eq.s32.totalorder %v20, %v51
  %vm56 = vcmp.eq.s32.totalorder %v21, %v51
  %vm57 = vcmp.eq.s32.totalorder %v20, %v54
  %vm58 = vcmp.eq.s32.totalorder %v21, %v54
  %vm59 = vmor %vm43, %vm55
  %vm60 = vmor %vm44, %vm56
  %vm61 = vmor %vm45, %vm57
  %vm62 = vmor %vm46, %vm58
  %v63 = vsel %vm59, 1, 0
  %v64 = vsel %vm60, 1, 0
  %v65 = vsel %vm61, 1, 0
  %v66 = vsel %vm62, 1, 0
  %v67 = vcvt.s32.f32 %v63
  %v68 = vcvt.s32.f32 %v64
  %v69 = vcvt.s32.f32 %v65
  %v70 = vcvt.s32.f32 %v66
  %v71 = vld [vmem:[%s2] sm:$0xff]
  %v72 = vld [vmem:[%s2 + $0x8] sm:$0xff]
  %v73 = vld [vmem:[%s2 + $0x10] sm:$0xff]
  %v74 = vld [vmem:[%s2 + $0x18] sm:$0xff]
  %v75 = vld [vmem:[%s2 + $0x20] sm:$0xff]
  %v76 = vld [vmem:[%s2 + $0x28] sm:$0xff]
  %v77 = vld [vmem:[%s2 + $0x30] sm:$0xff]
  %v78 = vld [vmem:[%s2 + $0x38] sm:$0xff]
  %v79 = vld [vmem:[%s2 + $0x40] sm:$0xff]
  %v80 = vld [vmem:[%s2 + $0x48] sm:$0xff]
  %v81 = vld [vmem:[%s2 + $0x50] sm:$0xff]
  %v82 = vld [vmem:[%s2 + $0x58] sm:$0xff]
  %v83 = vld [vmem:[%s2 + $0x60] sm:$0xff]
  %v84 = vld [vmem:[%s2 + $0x68] sm:$0xff]
  %v85 = vld [vmem:[%s2 + $0x70] sm:$0xff]
  %v86 = vld [vmem:[%s2 + $0x78] sm:$0xff]
  %v87 = vld [vmem:[%s2 + $0x80] sm:$0xff]
  %v88 = vld [vmem:[%s2 + $0x88] sm:$0xff]
  %v89 = vld [vmem:[%s2 + $0x90] sm:$0xff]
  %v90 = vld [vmem:[%s2 + $0x98] sm:$0xff]
  %v91 = vld [vmem:[%s2 + $0xa0] sm:$0xff]
  %v92 = vld [vmem:[%s2 + $0xa8] sm:$0xff]
  %v93 = vld [vmem:[%s2 + $0xb0] sm:$0xff]
  %v94 = vld [vmem:[%s2 + $0xb8] sm:$0xff]
  %v95 = vld [vmem:[%s2 + $0xc0] sm:$0xff]
  %v96 = vld [vmem:[%s2 + $0xc8] sm:$0xff]
  %v97 = vld [vmem:[%s2 + $0xd0] sm:$0xff]
  %v98 = vld [vmem:[%s2 + $0xd8] sm:$0xff]
  %v99 = vld [vmem:[%s2 + $0xe0] sm:$0xff]
  %v100 = vld [vmem:[%s2 + $0xe8] sm:$0xff]
  %v101 = vld [vmem:[%s2 + $0xf0] sm:$0xff]
  %v102 = vld [vmem:[%s2 + $0xf8] sm:$0xff]
  %103 = vmatprep.subr.mxu0 0.0
  %104 = vmatpush1.msra.mxu0 %v71
  %105 = vmatprep.subr.mxu0 0.0
  %106 = vmatpush1.msra.mxu0 %v72
  %107 = vmatprep.subr.mxu0 0.0
  %108 = vmatpush1.msra.mxu0 %v73
  %109 = vmatprep.subr.mxu0 0.0
  %110 = vmatpush1.msra.mxu0 %v74
  %111 = vmatprep.subr.mxu0 0.0
  %112 = vmatpush1.msra.mxu0 %v75
  %113 = vmatprep.subr.mxu0 0.0
  %114 = vmatpush1.msra.mxu0 %v76
  %115 = vmatprep.subr.mxu0 0.0
  %116 = vmatpush1.msra.mxu0 %v77
  %117 = vmatprep.subr.mxu0 0.0
  %118 = vmatpush1.msra.mxu0 %v78
  %119 = vmatprep.subr.mxu0 0.0
  %120 = vmatpush1.msra.mxu0 %v79
  %121 = vmatprep.subr.mxu0 0.0
  %122 = vmatpush1.msra.mxu0 %v80
  %123 = vmatprep.subr.mxu0 0.0
  %124 = vmatpush1.msra.mxu0 %v81
  %125 = vmatprep.subr.mxu0 0.0
  %126 = vmatpush1.msra.mxu0 %v82
  %127 = vmatprep.subr.mxu0 0.0
  %128 = vmatpush1.msra.mxu0 %v83
  %129 = vmatprep.subr.mxu0 0.0
  %130 = vmatpush1.msra.mxu0 %v84
  %131 = vmatprep.subr.mxu0 0.0
  %132 = vmatpush1.msra.mxu0 %v85
  %133 = vmatprep.subr.mxu0 0.0
  %134 = vmatpush1.msra.mxu0 %v86
  %135 = vmatprep.subr.mxu0 0.0
  %136 = vmatpush1.msra.mxu0 %v87
  %137 = vmatprep.subr.mxu0 0.0
  %138 = vmatpush1.msra.mxu0 %v88
  %139 = vmatprep.subr.mxu0 0.0
  %140 = vmatpush1.msra.mxu0 %v89
  %141 = vmatprep.subr.mxu0 0.0
  %142 = vmatpush1.msra.mxu0 %v90
  %143 = vmatprep.subr.mxu0 0.0
  %144 = vmatpush1.msra.mxu0 %v91
  %145 = vmatprep.subr.mxu0 0.0
  %146 = vmatpush1.msra.mxu0 %v92
  %147 = vmatprep.subr.mxu0 0.0
  %148 = vmatpush1.msra.mxu0 %v93
  %149 = vmatprep.subr.mxu0 0.0
  %150 = vmatpush1.msra.mxu0 %v94
  %151 = vmatprep.subr.mxu0 0.0
  %152 = vmatpush1.msra.mxu0 %v95
  %153 = vmatprep.subr.mxu0 0.0
  %154 = vmatpush1.msra.mxu0 %v96
  %155 = vmatprep.subr.mxu0 0.0
  %156 = vmatpush1.msra.mxu0 %v97
  %157 = vmatprep.subr.mxu0 0.0
  %158 = vmatpush1.msra.mxu0 %v98
  %159 = vmatprep.subr.mxu0 0.0
  %160 = vmatpush1.msra.mxu0 %v99
  %161 = vmatprep.subr.mxu0 0.0
  %162 = vmatpush1.msra.mxu0 %v100
  %163 = vmatprep.subr.mxu0 0.0
  %164 = vmatpush1.msra.mxu0 %v101
  %165 = vmatprep.subr.mxu0 0.0
  %166 = vmatpush1.msra.mxu0 %v102
  %167 = vmatprep.mubr.f32.mxu0 %v68
  %168 = vmatmul.mubr.f32.gmra.mrb[0].mxu0 %v67
  %v169 = vpop.f32.mrb[0].mxu0
  %v170 = vadd.f32 0.0, %v169
  %v171 = vpop.f32.mrb[0].mxu0
  %172 = vmatprep.mubr.f32.mxu0 %v70
  %173 = vmatmul.mubr.f32.gmra.mrb[0].mxu0 %v69
  %v174 = vpop.f32.mrb[0].mxu0
  %v175 = vadd.f32 0.0, %v174
  %v176 = vpop.f32.mrb[0].mxu0
  %177 = vdwg.mxu0
  %v178 = vld [vmem:[%s3] sm:$0x1]
  %v179 = vld [vmem:[%s3 + $0x1] sm:$0x1]
  %vm180 = vcmask 261120
  %v181 = vsel %vm180, %v170, 0.0
  %182 = vadd.xlane.f32.xlu0 %v181
  %v183 = vpop.xlane.xlu0 %182
  %v184 = vsel %vm180, %v175, 0.0
  %185 = vadd.xlane.f32.xlu0 %v184
  %v186 = vpop.xlane.xlu0 %185
  %v187 = vrcp.pop 32.0
  %v188 = vmul.f32 %v183, %v187
  %v189 = vmul.f32 %v186, %v187
  %v190 = vsub.f32 %v170, %v188
  %v191 = vsub.f32 %v175, %v189
  %v192 = vmul.f32 %v190, %v190
  %v193 = vmul.f32 %v191, %v191
  %v194 = vsel %vm180, %v192, 0.0
  %195 = vadd.xlane.f32.xlu0 %v194
  %v196 = vpop.xlane.xlu0 %195
  %v197 = vsel %vm180, %v193, 0.0
  %198 = vadd.xlane.f32.xlu0 %v197
  %v199 = vpop.xlane.xlu0 %198
  %v200 = vmul.f32 %v196, %v187
  %v201 = vmul.f32 %v199, %v187
  %v202 = vadd.f32 %v200, 1e-12
  %v203 = vadd.f32 %v201, 1e-12
  %v204 = vrsqrt.pop %v202
  %v205 = vrsqrt.pop %v203
  %v206 = vmul.f32 %v190, %v204
  %v207 = vmul.f32 %v191, %v205
  %v208 = vlaneseq
  %v209 = vshrl.u32 %v208, 7
  %v210 = vsub.s32 0, %v209
  %v211 = vrot.slane %v178, %v210
  %v212 = vmul.f32 %v206, %v211
  %v213 = vmul.f32 %v207, %v211
  %v214 = vlaneseq
  %v215 = vshrl.u32 %v214, 7
  %v216 = vsub.s32 0, %v215
  %v217 = vrot.slane %v179, %v216
  %v218 = vadd.f32 %v212, %v217
  %v219 = vadd.f32 %v213, %v217
  %v220 = vld [vmem:[%s3 + $0x8] sm:$0xff]
  %v221 = vld [vmem:[%s3 + $0x10] sm:$0xff]
  %v222 = vld [vmem:[%s3 + $0x18] sm:$0xff]
  %v223 = vld [vmem:[%s3 + $0x20] sm:$0xff]
  %v224 = vld [vmem:[%s3 + $0x28] sm:$0x1]
  %v225 = vlaneseq
  %v226 = vshrl.u32 %v225, 7
  %v227 = vsub.s32 0, %v226
  %v228 = vrot.slane %v224, %v227
  %v230 = vsel %vm180, %v218, 0
  %v233 = vsel %vm180, %v219, 0
  %235 = vmatprep.subr.mxu0 0.0
  %236 = vmatpush1.msra.mxu0 %v220
  %237 = vmatprep.subr.mxu0 0.0
  %238 = vmatpush1.msra.mxu0 %v221
  %239 = vmatprep.subr.mxu0 0.0
  %240 = vmatpush1.msra.mxu0 %v222
  %241 = vmatprep.subr.mxu0 0.0
  %242 = vmatpush1.msra.mxu0 %v223
  %243 = vmatprep.subr.mxu0 0.0
  %244 = vmatpush1.msra.mxu0 0.0
  %245 = vmatprep.subr.mxu0 0.0
  %246 = vmatpush1.msra.mxu0 0.0
  %247 = vmatprep.subr.mxu0 0.0
  %248 = vmatpush1.msra.mxu0 0.0
  %249 = vmatprep.subr.mxu0 0.0
  %250 = vmatpush1.msra.mxu0 0.0
  %251 = vmatprep.subr.mxu0 0.0
  %252 = vmatpush1.msra.mxu0 0.0
  %253 = vmatprep.subr.mxu0 0.0
  %254 = vmatpush1.msra.mxu0 0.0
  %255 = vmatprep.subr.mxu0 0.0
  %256 = vmatpush1.msra.mxu0 0.0
  %257 = vmatprep.subr.mxu0 0.0
  %258 = vmatpush1.msra.mxu0 0.0
  %259 = vmatprep.subr.mxu0 0.0
  %260 = vmatpush1.msra.mxu0 0.0
  %261 = vmatprep.subr.mxu0 0.0
  %262 = vmatpush1.msra.mxu0 0.0
  %263 = vmatprep.subr.mxu0 0.0
  %264 = vmatpush1.msra.mxu0 0.0
  %265 = vmatprep.subr.mxu0 0.0
  %266 = vmatpush1.msra.mxu0 0.0
  %267 = vmatprep.subr.mxu0 0.0
  %268 = vmatpush1.msra.mxu0 0.0
  %269 = vmatprep.subr.mxu0 0.0
  %270 = vmatpush1.msra.mxu0 0.0
  %271 = vmatprep.subr.mxu0 0.0
  %272 = vmatpush1.msra.mxu0 0.0
  %273 = vmatprep.subr.mxu0 0.0
  %274 = vmatpush1.msra.mxu0 0.0
  %275 = vmatprep.subr.mxu0 0.0
  %276 = vmatpush1.msra.mxu0 0.0
  %277 = vmatprep.subr.mxu0 0.0
  %278 = vmatpush1.msra.mxu0 0.0
  %279 = vmatprep.subr.mxu0 0.0
  %280 = vmatpush1.msra.mxu0 0.0
  %281 = vmatprep.subr.mxu0 0.0
  %282 = vmatpush1.msra.mxu0 0.0
  %283 = vmatprep.subr.mxu0 0.0
  %284 = vmatpush1.msra.mxu0 0.0
  %285 = vmatprep.subr.mxu0 0.0
  %286 = vmatpush1.msra.mxu0 0.0
  %287 = vmatprep.subr.mxu0 0.0
  %288 = vmatpush1.msra.mxu0 0.0
  %289 = vmatprep.subr.mxu0 0.0
  %290 = vmatpush1.msra.mxu0 0.0
  %291 = vmatprep.subr.mxu0 0.0
  %292 = vmatpush1.msra.mxu0 0.0
  %293 = vmatprep.subr.mxu0 0.0
  %294 = vmatpush1.msra.mxu0 0.0
  %295 = vmatprep.subr.mxu0 0.0
  %296 = vmatpush1.msra.mxu0 0.0
  %297 = vmatprep.subr.mxu0 0.0
  %298 = vmatpush1.msra.mxu0 0.0
  %299 = vmatprep.mubr.f32.mxu0 0.0
  %300 = vmatmul.mubr.f32.gmra.mrb[0].mxu0 %v230
  %v301 = vpop.f32.mrb[0].mxu0
  %v302 = vadd.f32 %v228, %v301
  %v303 = vpop.f32.mrb[0].mxu0
  %304 = vmatprep.mubr.f32.mxu0 0.0
  %305 = vmatmul.mubr.f32.gmra.mrb[0].mxu0 %v233
  %v306 = vpop.f32.mrb[0].mxu0
  %v307 = vadd.f32 %v228, %v306
  %v308 = vpop.f32.mrb[0].mxu0
  %309 = vdwg.mxu0
  %312 = vrot.lane.b32.xlu0 %v302, 120
  %v313 = vpop.permute.xlu0 %312
  %314 = vrot.lane.b32.xlu0 %v307, 120
  %v315 = vpop.permute.xlu0 %314
  %316 = vrot.lane.b32.xlu0 %v302, 112
  %v317 = vpop.permute.xlu0 %316
  %318 = vrot.lane.b32.xlu0 %v307, 112
  %v319 = vpop.permute.xlu0 %318
  %320 = vrot.lane.b32.xlu0 %v302, 104
  %v321 = vpop.permute.xlu0 %320
  %322 = vrot.lane.b32.xlu0 %v307, 104
  %v323 = vpop.permute.xlu0 %322
  %v324 = vld [vmem:[%s1] sm:$0x3]
  %v325 = vcvt.s32.f32 %v324
  %v326 = vsub.f32 1.0, %v325
  %v327 = vmul.f32 %v326, -1e+09
  %v329 = vrot.slane %v327, 6
  %v331 = vrot.slane %v327, 4
  %v333 = vrot.slane %v327, 2
  %vm335 = vcmask 1041408
  %v336 = vsel %vm335, %v327, %v329
  %vm337 = vcmask 1043456
  %v338 = vsel %vm337, %v336, %v331
  %vm339 = vcmask 1045504
  %v340 = vsel %vm339, %v338, %v333
  %v342 = vcombine.high %v340, %v340
  %v344 = vunpack.c.l.s4 1966171168
  %v345 = vunpack.c.0.s8 %v344
  %v346 = vlaneseq
  %v347 = vshrl.u32 %v346, 7
  %v348 = vsub.s32 %v345, %v347
  %v349 = vrot.slane %v340, %v348
  %v351 = vunpack.c.l.s4 1966171168
  %v352 = vunpack.c.0.s8 %v351
  %v353 = vlaneseq
  %v354 = vshrl.u32 %v353, 7
  %v355 = vsub.s32 %v352, %v354
  %v356 = vrot.slane %v342, %v355
  %v357 = vcombine.high %v349, %v349
  %v358 = vcombine.high %v356, %v356
  %v360 = vunpack.c.l.s4 1966171168
  %v361 = vunpack.c.0.s8 %v360
  %v362 = vlaneseq
  %v363 = vshrl.u32 %v362, 7
  %v364 = vsub.s32 %v361, %v363
  %v365 = vrot.slane %v349, %v364
  %v367 = vunpack.c.l.s4 1966171168
  %v368 = vunpack.c.0.s8 %v367
  %v369 = vlaneseq
  %v370 = vshrl.u32 %v369, 7
  %v371 = vsub.s32 %v368, %v370
  %v372 = vrot.slane %v356, %v371
  %v374 = vunpack.c.l.s4 1966171168
  %v375 = vunpack.c.0.s8 %v374
  %v376 = vlaneseq
  %v377 = vshrl.u32 %v376, 7
  %v378 = vsub.s32 %v375, %v377
  %v379 = vrot.slane %v357, %v378
  %v381 = vunpack.c.l.s4 1966171168
  %v382 = vunpack.c.0.s8 %v381
  %v383 = vlaneseq
  %v384 = vshrl.u32 %v383, 7
  %v385 = vsub.s32 %v382, %v384
  %v386 = vrot.slane %v358, %v385
  %v387 = vcombine.high %v365, %v365
  %v388 = vcombine.high %v372, %v372
  %v389 = vcombine.high %v379, %v379
  %v390 = vcombine.high %v386, %v386
  %v391 = vlaneseq
  %v392 = vshrl.u32 %v391, 7
  %v393 = vsub.s32 0, %v392
  %v394 = vrot.slane %v365, %v393
  %v395 = vlaneseq
  %v396 = vshrl.u32 %v395, 7
  %v397 = vsub.s32 0, %v396
  %v398 = vrot.slane %v379, %v397
  %v399 = vlaneseq
  %v400 = vshrl.u32 %v399, 7
  %v401 = vsub.s32 0, %v400
  %v402 = vrot.slane %v387, %v401
  %v403 = vlaneseq
  %v404 = vshrl.u32 %v403, 7
  %v405 = vsub.s32 0, %v404
  %v406 = vrot.slane %v389, %v405
  %v407 = vlaneseq
  %v408 = vshrl.u32 %v407, 7
  %v409 = vsub.s32 0, %v408
  %v410 = vrot.slane %v372, %v409
  %v411 = vlaneseq
  %v412 = vshrl.u32 %v411, 7
  %v413 = vsub.s32 0, %v412
  %v414 = vrot.slane %v386, %v413
  %v415 = vlaneseq
  %v416 = vshrl.u32 %v415, 7
  %v417 = vsub.s32 0, %v416
  %v418 = vrot.slane %v388, %v417
  %v419 = vlaneseq
  %v420 = vshrl.u32 %v419, 7
  %v421 = vsub.s32 0, %v420
  %v422 = vrot.slane %v390, %v421
  %431 = vrot.lane.b32.xlu0 %v302, 96
  %v432 = vpop.permute.xlu0 %431
  %vm433 = vcmask 64512
  %v434 = vsel %vm433, %v302, 0
  %v436 = vsel %vm433, %v432, 0
  %438 = vmatprep.subr.mxu0 0.0
  %439 = vmatpush1.xpose.msra.mxu0 %v436
  %440 = vmatprep.subr.mxu0 0.0
  %441 = vmatpush1.xpose.msra.mxu0 0.0
  %442 = vmatprep.subr.mxu0 0.0
  %443 = vmatpush1.xpose.msra.mxu0 0.0
  %444 = vmatprep.subr.mxu0 0.0
  %445 = vmatpush1.xpose.msra.mxu0 0.0
  %446 = vmatprep.subr.mxu0 0.0
  %447 = vmatpush1.xpose.msra.mxu0 0.0
  %448 = vmatprep.subr.mxu0 0.0
  %449 = vmatpush1.xpose.msra.mxu0 0.0
  %450 = vmatprep.subr.mxu0 0.0
  %451 = vmatpush1.xpose.msra.mxu0 0.0
  %452 = vmatprep.subr.mxu0 0.0
  %453 = vmatpush1.xpose.msra.mxu0 0.0
  %454 = vmatprep.subr.mxu0 0.0
  %455 = vmatpush1.xpose.msra.mxu0 0.0
  %456 = vmatprep.subr.mxu0 0.0
  %457 = vmatpush1.xpose.msra.mxu0 0.0
  %458 = vmatprep.subr.mxu0 0.0
  %459 = vmatpush1.xpose.msra.mxu0 0.0
  %460 = vmatprep.subr.mxu0 0.0
  %461 = vmatpush1.xpose.msra.mxu0 0.0
  %462 = vmatprep.subr.mxu0 0.0
  %463 = vmatpush1.xpose.msra.mxu0 0.0
  %464 = vmatprep.subr.mxu0 0.0
  %465 = vmatpush1.xpose.msra.mxu0 0.0
  %466 = vmatprep.subr.mxu0 0.0
  %467 = vmatpush1.xpose.msra.mxu0 0.0
  %468 = vmatprep.subr.mxu0 0.0
  %469 = vmatpush1.xpose.msra.mxu0 0.0
  %470 = vmatprep.subr.mxu0 0.0
  %471 = vmatpush1.xpose.msra.mxu0 0.0
  %472 = vmatprep.subr.mxu0 0.0
  %473 = vmatpush1.xpose.msra.mxu0 0.0
  %474 = vmatprep.subr.mxu0 0.0
  %475 = vmatpush1.xpose.msra.mxu0 0.0
  %476 = vmatprep.subr.mxu0 0.0
  %477 = vmatpush1.xpose.msra.mxu0 0.0
  %478 = vmatprep.subr.mxu0 0.0
  %479 = vmatpush1.xpose.msra.mxu0 0.0
  %480 = vmatprep.subr.mxu0 0.0
  %481 = vmatpush1.xpose.msra.mxu0 0.0
  %482 = vmatprep.subr.mxu0 0.0
  %483 = vmatpush1.xpose.msra.mxu0 0.0
  %484 = vmatprep.subr.mxu0 0.0
  %485 = vmatpush1.xpose.msra.mxu0 0.0
  %486 = vmatprep.subr.mxu0 0.0
  %487 = vmatpush1.xpose.msra.mxu0 0.0
  %488 = vmatprep.subr.mxu0 0.0
  %489 = vmatpush1.xpose.msra.mxu0 0.0
  %490 = vmatprep.subr.mxu0 0.0
  %491 = vmatpush1.xpose.msra.mxu0 0.0
  %492 = vmatprep.subr.mxu0 0.0
  %493 = vmatpush1.xpose.msra.mxu0 0.0
  %494 = vmatprep.subr.mxu0 0.0
  %495 = vmatpush1.xpose.msra.mxu0 0.0
  %496 = vmatprep.subr.mxu0 0.0
  %497 = vmatpush1.xpose.msra.mxu0 0.0
  %498 = vmatprep.subr.mxu0 0.0
  %499 = vmatpush1.xpose.msra.mxu0 0.0
  %500 = vmatprep.subr.mxu0 0.0
  %501 = vmatpush1.xpose.msra.mxu0 0.0
  %502 = vmatprep.mubr.f32.mxu0 0.0
  %503 = vmatmul.mubr.f32.gmra.mrb[0].mxu0 %v434
  %v504 = vpop.f32.mrb[0].mxu0
  %v505 = vadd.f32 0.0, %v504
  %v506 = vpop.f32.mrb[0].mxu0
  %507 = vdwg.mxu0
  %508 = vrot.lane.b32.xlu0 %v307, 96
  %v509 = vpop.permute.xlu0 %508
  %v510 = vsel %vm433, %v307, 0
  %v512 = vsel %vm433, %v509, 0
  %514 = vmatprep.subr.mxu0 0.0
  %515 = vmatpush1.xpose.msra.mxu0 %v512
  %516 = vmatprep.subr.mxu0 0.0
  %517 = vmatpush1.xpose.msra.mxu0 0.0
  %518 = vmatprep.subr.mxu0 0.0
  %519 = vmatpush1.xpose.msra.mxu0 0.0
  %520 = vmatprep.subr.mxu0 0.0
  %521 = vmatpush1.xpose.msra.mxu0 0.0
  %522 = vmatprep.subr.mxu0 0.0
  %523 = vmatpush1.xpose.msra.mxu0 0.0
  %524 = vmatprep.subr.mxu0 0.0
  %525 = vmatpush1.xpose.msra.mxu0 0.0
  %526 = vmatprep.subr.mxu0 0.0
  %527 = vmatpush1.xpose.msra.mxu0 0.0
  %528 = vmatprep.subr.mxu0 0.0
  %529 = vmatpush1.xpose.msra.mxu0 0.0
  %530 = vmatprep.subr.mxu0 0.0
  %531 = vmatpush1.xpose.msra.mxu0 0.0
  %532 = vmatprep.subr.mxu0 0.0
  %533 = vmatpush1.xpose.msra.mxu0 0.0
  %534 = vmatprep.subr.mxu0 0.0
  %535 = vmatpush1.xpose.msra.mxu0 0.0
  %536 = vmatprep.subr.mxu0 0.0
  %537 = vmatpush1.xpose.msra.mxu0 0.0
  %538 = vmatprep.subr.mxu0 0.0
  %539 = vmatpush1.xpose.msra.mxu0 0.0
  %540 = vmatprep.subr.mxu0 0.0
  %541 = vmatpush1.xpose.msra.mxu0 0.0
  %542 = vmatprep.subr.mxu0 0.0
  %543 = vmatpush1.xpose.msra.mxu0 0.0
  %544 = vmatprep.subr.mxu0 0.0
  %545 = vmatpush1.xpose.msra.mxu0 0.0
  %546 = vmatprep.subr.mxu0 0.0
  %547 = vmatpush1.xpose.msra.mxu0 0.0
  %548 = vmatprep.subr.mxu0 0.0
  %549 = vmatpush1.xpose.msra.mxu0 0.0
  %550 = vmatprep.subr.mxu0 0.0
  %551 = vmatpush1.xpose.msra.mxu0 0.0
  %552 = vmatprep.subr.mxu0 0.0
  %553 = vmatpush1.xpose.msra.mxu0 0.0
  %554 = vmatprep.subr.mxu0 0.0
  %555 = vmatpush1.xpose.msra.mxu0 0.0
  %556 = vmatprep.subr.mxu0 0.0
  %557 = vmatpush1.xpose.msra.mxu0 0.0
  %558 = vmatprep.subr.mxu0 0.0
  %559 = vmatpush1.xpose.msra.mxu0 0.0
  %560 = vmatprep.subr.mxu0 0.0
  %561 = vmatpush1.xpose.msra.mxu0 0.0
  %562 = vmatprep.subr.mxu0 0.0
  %563 = vmatpush1.xpose.msra.mxu0 0.0
  %564 = vmatprep.subr.mxu0 0.0
  %565 = vmatpush1.xpose.msra.mxu0 0.0
  %566 = vmatprep.subr.mxu0 0.0
  %567 = vmatpush1.xpose.msra.mxu0 0.0
  %568 = vmatprep.subr.mxu0 0.0
  %569 = vmatpush1.xpose.msra.mxu0 0.0
  %570 = vmatprep.subr.mxu0 0.0
  %571 = vmatpush1.xpose.msra.mxu0 0.0
  %572 = vmatprep.subr.mxu0 0.0
  %573 = vmatpush1.xpose.msra.mxu0 0.0
  %574 = vmatprep.subr.mxu0 0.0
  %575 = vmatpush1.xpose.msra.mxu0 0.0
  %576 = vmatprep.subr.mxu0 0.0
  %577 = vmatpush1.xpose.msra.mxu0 0.0
  %578 = vmatprep.mubr.f32.mxu0 0.0
  %579 = vmatmul.mubr.f32.gmra.mrb[0].mxu0 %v510
  %v580 = vpop.f32.mrb[0].mxu0
  %v581 = vadd.f32 0.0, %v580
  %v582 = vpop.f32.mrb[0].mxu0
  %583 = vdwg.mxu0
  %584 = vrot.lane.b32.xlu0 %v313, 96
  %v585 = vpop.permute.xlu0 %584
  %v586 = vsel %vm433, %v313, 0
  %v588 = vsel %vm433, %v585, 0
  %590 = vmatprep.subr.mxu0 0.0
  %591 = vmatpush1.xpose.msra.mxu0 %v588
  %592 = vmatprep.subr.mxu0 0.0
  %593 = vmatpush1.xpose.msra.mxu0 0.0
  %594 = vmatprep.subr.mxu0 0.0
  %595 = vmatpush1.xpose.msra.mxu0 0.0
  %596 = vmatprep.subr.mxu0 0.0
  %597 = vmatpush1.xpose.msra.mxu0 0.0
  %598 = vmatprep.subr.mxu0 0.0
  %599 = vmatpush1.xpose.msra.mxu0 0.0
  %600 = vmatprep.subr.mxu0 0.0
  %601 = vmatpush1.xpose.msra.mxu0 0.0
  %602 = vmatprep.subr.mxu0 0.0
  %603 = vmatpush1.xpose.msra.mxu0 0.0
  %604 = vmatprep.subr.mxu0 0.0
  %605 = vmatpush1.xpose.msra.mxu0 0.0
  %606 = vmatprep.subr.mxu0 0.0
  %607 = vmatpush1.xpose.msra.mxu0 0.0
  %608 = vmatprep.subr.mxu0 0.0
  %609 = vmatpush1.xpose.msra.mxu0 0.0
  %610 = vmatprep.subr.mxu0 0.0
  %611 = vmatpush1.xpose.msra.mxu0 0.0
  %612 = vmatprep.subr.mxu0 0.0
  %613 = vmatpush1.xpose.msra.mxu0 0.0
  %614 = vmatprep.subr.mxu0 0.0
  %615 = vmatpush1.xpose.msra.mxu0 0.0
  %616 = vmatprep.subr.mxu0 0.0
  %617 = vmatpush1.xpose.msra.mxu0 0.0
  %618 = vmatprep.subr.mxu0 0.0
  %619 = vmatpush1.xpose.msra.mxu0 0.0
  %620 = vmatprep.subr.mxu0 0.0
  %621 = vmatpush1.xpose.msra.mxu0 0.0
  %622 = vmatprep.subr.mxu0 0.0
  %623 = vmatpush1.xpose.msra.mxu0 0.0
  %624 = vmatprep.subr.mxu0 0.0
  %625 = vmatpush1.xpose.msra.mxu0 0.0
  %626 = vmatprep.subr.mxu0 0.0
  %627 = vmatpush1.xpose.msra.mxu0 0.0
  %628 = vmatprep.subr.mxu0 0.0
  %629 = vmatpush1.xpose.msra.mxu0 0.0
  %630 = vmatprep.subr.mxu0 0.0
  %631 = vmatpush1.xpose.msra.mxu0 0.0
  %632 = vmatprep.subr.mxu0 0.0
  %633 = vmatpush1.xpose.msra.mxu0 0.0
  %634 = vmatprep.subr.mxu0 0.0
  %635 = vmatpush1.xpose.msra.mxu0 0.0
  %636 = vmatprep.subr.mxu0 0.0
  %637 = vmatpush1.xpose.msra.mxu0 0.0
  %638 = vmatprep.subr.mxu0 0.0
  %639 = vmatpush1.xpose.msra.mxu0 0.0
  %640 = vmatprep.subr.mxu0 0.0
  %641 = vmatpush1.xpose.msra.mxu0 0.0
  %642 = vmatprep.subr.mxu0 0.0
  %643 = vmatpush1.xpose.msra.mxu0 0.0
  %644 = vmatprep.subr.mxu0 0.0
  %645 = vmatpush1.xpose.msra.mxu0 0.0
  %646 = vmatprep.subr.mxu0 0.0
  %647 = vmatpush1.xpose.msra.mxu0 0.0
  %648 = vmatprep.subr.mxu0 0.0
  %649 = vmatpush1.xpose.msra.mxu0 0.0
  %650 = vmatprep.subr.mxu0 0.0
  %651 = vmatpush1.xpose.msra.mxu0 0.0
  %652 = vmatprep.subr.mxu0 0.0
  %653 = vmatpush1.xpose.msra.mxu0 0.0
  %654 = vmatprep.mubr.f32.mxu0 0.0
  %655 = vmatmul.mubr.f32.gmra.mrb[0].mxu0 %v586
  %v656 = vpop.f32.mrb[0].mxu0
  %v657 = vadd.f32 0.0, %v656
  %v658 = vpop.f32.mrb[0].mxu0
  %659 = vdwg.mxu0
  %660 = vrot.lane.b32.xlu0 %v315, 96
  %v661 = vpop.permute.xlu0 %660
  %v662 = vsel %vm433, %v315, 0
  %v664 = vsel %vm433, %v661, 0
  %666 = vmatprep.subr.mxu0 0.0
  %667 = vmatpush1.xpose.msra.mxu0 %v664
  %668 = vmatprep.subr.mxu0 0.0
  %669 = vmatpush1.xpose.msra.mxu0 0.0
  %670 = vmatprep.subr.mxu0 0.0
  %671 = vmatpush1.xpose.msra.mxu0 0.0
  %672 = vmatprep.subr.mxu0 0.0
  %673 = vmatpush1.xpose.msra.mxu0 0.0
  %674 = vmatprep.subr.mxu0 0.0
  %675 = vmatpush1.xpose.msra.mxu0 0.0
  %676 = vmatprep.subr.mxu0 0.0
  %677 = vmatpush1.xpose.msra.mxu0 0.0
  %678 = vmatprep.subr.mxu0 0.0
  %679 = vmatpush1.xpose.msra.mxu0 0.0
  %680 = vmatprep.subr.mxu0 0.0
  %681 = vmatpush1.xpose.msra.mxu0 0.0
  %682 = vmatprep.subr.mxu0 0.0
  %683 = vmatpush1.xpose.msra.mxu0 0.0
  %684 = vmatprep.subr.mxu0 0.0
  %685 = vmatpush1.xpose.msra.mxu0 0.0
  %686 = vmatprep.subr.mxu0 0.0
  %687 = vmatpush1.xpose.msra.mxu0 0.0
  %688 = vmatprep.subr.mxu0 0.0
  %689 = vmatpush1.xpose.msra.mxu0 0.0
  %690 = vmatprep.subr.mxu0 0.0
  %691 = vmatpush1.xpose.msra.mxu0 0.0
  %692 = vmatprep.subr.mxu0 0.0
  %693 = vmatpush1.xpose.msra.mxu0 0.0
  %694 = vmatprep.subr.mxu0 0.0
  %695 = vmatpush1.xpose.msra.mxu0 0.0
  %696 = vmatprep.subr.mxu0 0.0
  %697 = vmatpush1.xpose.msra.mxu0 0.0
  %698 = vmatprep.subr.mxu0 0.0
  %699 = vmatpush1.xpose.msra.mxu0 0.0
  %700 = vmatprep.subr.mxu0 0.0
  %701 = vmatpush1.xpose.msra.mxu0 0.0
  %702 = vmatprep.subr.mxu0 0.0
  %703 = vmatpush1.xpose.msra.mxu0 0.0
  %704 = vmatprep.subr.mxu0 0.0
  %705 = vmatpush1.xpose.msra.mxu0 0.0
  %706 = vmatprep.subr.mxu0 0.0
  %707 = vmatpush1.xpose.msra.mxu0 0.0
  %708 = vmatprep.subr.mxu0 0.0
  %709 = vmatpush1.xpose.msra.mxu0 0.0
  %710 = vmatprep.subr.mxu0 0.0
  %711 = vmatpush1.xpose.msra.mxu0 0.0
  %712 = vmatprep.subr.mxu0 0.0
  %713 = vmatpush1.xpose.msra.mxu0 0.0
  %714 = vmatprep.subr.mxu0 0.0
  %715 = vmatpush1.xpose.msra.mxu0 0.0
  %716 = vmatprep.subr.mxu0 0.0
  %717 = vmatpush1.xpose.msra.mxu0 0.0
  %718 = vmatprep.subr.mxu0 0.0
  %719 = vmatpush1.xpose.msra.mxu0 0.0
  %720 = vmatprep.subr.mxu0 0.0
  %721 = vmatpush1.xpose.msra.mxu0 0.0
  %722 = vmatprep.subr.mxu0 0.0
  %723 = vmatpush1.xpose.msra.mxu0 0.0
  %724 = vmatprep.subr.mxu0 0.0
  %725 = vmatpush1.xpose.msra.mxu0 0.0
  %726 = vmatprep.subr.mxu0 0.0
  %727 = vmatpush1.xpose.msra.mxu0 0.0
  %728 = vmatprep.subr.mxu0 0.0
  %729 = vmatpush1.xpose.msra.mxu0 0.0
  %730 = vmatprep.mubr.f32.mxu0 0.0
  %731 = vmatmul.mubr.f32.gmra.mrb[0].mxu0 %v662
  %v732 = vpop.f32.mrb[0].mxu0
  %v733 = vadd.f32 0.0, %v732
  %v734 = vpop.f32.mrb[0].mxu0
  %735 = vdwg.mxu0
  %736 = vrot.lane.b32.xlu0 %v317, 96
  %v737 = vpop.permute.xlu0 %736
  %v738 = vsel %vm433, %v317, 0
  %v740 = vsel %vm433, %v737, 0
  %742 = vmatprep.subr.mxu0 0.0
  %743 = vmatpush1.xpose.msra.mxu0 %v740
  %744 = vmatprep.subr.mxu0 0.0
  %745 = vmatpush1.xpose.msra.mxu0 0.0
  %746 = vmatprep.subr.mxu0 0.0
  %747 = vmatpush1.xpose.msra.mxu0 0.0
  %748 = vmatprep.subr.mxu0 0.0
  %749 = vmatpush1.xpose.msra.mxu0 0.0
  %750 = vmatprep.subr.mxu0 0.0
  %751 = vmatpush1.xpose.msra.mxu0 0.0
  %752 = vmatprep.subr.mxu0 0.0
  %753 = vmatpush1.xpose.msra.mxu0 0.0
  %754 = vmatprep.subr.mxu0 0.0
  %755 = vmatpush1.xpose.msra.mxu0 0.0
  %756 = vmatprep.subr.mxu0 0.0
  %757 = vmatpush1.xpose.msra.mxu0 0.0
  %758 = vmatprep.subr.mxu0 0.0
  %759 = vmatpush1.xpose.msra.mxu0 0.0
  %760 = vmatprep.subr.mxu0 0.0
  %761 = vmatpush1.xpose.msra.mxu0 0.0
  %762 = vmatprep.subr.mxu0 0.0
  %763 = vmatpush1.xpose.msra.mxu0 0.0
  %764 = vmatprep.subr.mxu0 0.0
  %765 = vmatpush1.xpose.msra.mxu0 0.0
  %766 = vmatprep.subr.mxu0 0.0
  %767 = vmatpush1.xpose.msra.mxu0 0.0
  %768 = vmatprep.subr.mxu0 0.0
  %769 = vmatpush1.xpose.msra.mxu0 0.0
  %770 = vmatprep.subr.mxu0 0.0
  %771 = vmatpush1.xpose.msra.mxu0 0.0
  %772 = vmatprep.subr.mxu0 0.0
  %773 = vmatpush1.xpose.msra.mxu0 0.0
  %774 = vmatprep.subr.mxu0 0.0
  %775 = vmatpush1.xpose.msra.mxu0 0.0
  %776 = vmatprep.subr.mxu0 0.0
  %777 = vmatpush1.xpose.msra.mxu0 0.0
  %778 = vmatprep.subr.mxu0 0.0
  %779 = vmatpush1.xpose.msra.mxu0 0.0
  %780 = vmatprep.subr.mxu0 0.0
  %781 = vmatpush1.xpose.msra.mxu0 0.0
  %782 = vmatprep.subr.mxu0 0.0
  %783 = vmatpush1.xpose.msra.mxu0 0.0
  %784 = vmatprep.subr.mxu0 0.0
  %785 = vmatpush1.xpose.msra.mxu0 0.0
  %786 = vmatprep.subr.mxu0 0.0
  %787 = vmatpush1.xpose.msra.mxu0 0.0
  %788 = vmatprep.subr.mxu0 0.0
  %789 = vmatpush1.xpose.msra.mxu0 0.0
  %790 = vmatprep.subr.mxu0 0.0
  %791 = vmatpush1.xpose.msra.mxu0 0.0
  %792 = vmatprep.subr.mxu0 0.0
  %793 = vmatpush1.xpose.msra.mxu0 0.0
  %794 = vmatprep.subr.mxu0 0.0
  %795 = vmatpush1.xpose.msra.mxu0 0.0
  %796 = vmatprep.subr.mxu0 0.0
  %797 = vmatpush1.xpose.msra.mxu0 0.0
  %798 = vmatprep.subr.mxu0 0.0
  %799 = vmatpush1.xpose.msra.mxu0 0.0
  %800 = vmatprep.subr.mxu0 0.0
  %801 = vmatpush1.xpose.msra.mxu0 0.0
  %802 = vmatprep.subr.mxu0 0.0
  %803 = vmatpush1.xpose.msra.mxu0 0.0
  %804 = vmatprep.subr.mxu0 0.0
  %805 = vmatpush1.xpose.msra.mxu0 0.0
  %806 = vmatprep.mubr.f32.mxu0 0.0
  %807 = vmatmul.mubr.f32.gmra.mrb[0].mxu0 %v738
  %v808 = vpop.f32.mrb[0].mxu0
  %v809 = vadd.f32 0.0, %v808
  %v810 = vpop.f32.mrb[0].mxu0
  %811 = vdwg.mxu0
  %812 = vrot.lane.b32.xlu0 %v319, 96
  %v813 = vpop.permute.xlu0 %812
  %v814 = vsel %vm433, %v319, 0
  %v816 = vsel %vm433, %v813, 0
  %818 = vmatprep.subr.mxu0 0.0
  %819 = vmatpush1.xpose.msra.mxu0 %v816
  %820 = vmatprep.subr.mxu0 0.0
  %821 = vmatpush1.xpose.msra.mxu0 0.0
  %822 = vmatprep.subr.mxu0 0.0
  %823 = vmatpush1.xpose.msra.mxu0 0.0
  %824 = vmatprep.subr.mxu0 0.0
  %825 = vmatpush1.xpose.msra.mxu0 0.0
  %826 = vmatprep.subr.mxu0 0.0
  %827 = vmatpush1.xpose.msra.mxu0 0.0
  %828 = vmatprep.subr.mxu0 0.0
  %829 = vmatpush1.xpose.msra.mxu0 0.0
  %830 = vmatprep.subr.mxu0 0.0
  %831 = vmatpush1.xpose.msra.mxu0 0.0
  %832 = vmatprep.subr.mxu0 0.0
  %833 = vmatpush1.xpose.msra.mxu0 0.0
  %834 = vmatprep.subr.mxu0 0.0
  %835 = vmatpush1.xpose.msra.mxu0 0.0
  %836 = vmatprep.subr.mxu0 0.0
  %837 = vmatpush1.xpose.msra.mxu0 0.0
  %838 = vmatprep.subr.mxu0 0.0
  %839 = vmatpush1.xpose.msra.mxu0 0.0
  %840 = vmatprep.subr.mxu0 0.0
  %841 = vmatpush1.xpose.msra.mxu0 0.0
  %842 = vmatprep.subr.mxu0 0.0
  %843 = vmatpush1.xpose.msra.mxu0 0.0
  %844 = vmatprep.subr.mxu0 0.0
  %845 = vmatpush1.xpose.msra.mxu0 0.0
  %846 = vmatprep.subr.mxu0 0.0
  %847 = vmatpush1.xpose.msra.mxu0 0.0
  %848 = vmatprep.subr.mxu0 0.0
  %849 = vmatpush1.xpose.msra.mxu0 0.0
  %850 = vmatprep.subr.mxu0 0.0
  %851 = vmatpush1.xpose.msra.mxu0 0.0
  %852 = vmatprep.subr.mxu0 0.0
  %853 = vmatpush1.xpose.msra.mxu0 0.0
  %854 = vmatprep.subr.mxu0 0.0
  %855 = vmatpush1.xpose.msra.mxu0 0.0
  %856 = vmatprep.subr.mxu0 0.0
  %857 = vmatpush1.xpose.msra.mxu0 0.0
  %858 = vmatprep.subr.mxu0 0.0
  %859 = vmatpush1.xpose.msra.mxu0 0.0
  %860 = vmatprep.subr.mxu0 0.0
  %861 = vmatpush1.xpose.msra.mxu0 0.0
  %862 = vmatprep.subr.mxu0 0.0
  %863 = vmatpush1.xpose.msra.mxu0 0.0
  %864 = vmatprep.subr.mxu0 0.0
  %865 = vmatpush1.xpose.msra.mxu0 0.0
  %866 = vmatprep.subr.mxu0 0.0
  %867 = vmatpush1.xpose.msra.mxu0 0.0
  %868 = vmatprep.subr.mxu0 0.0
  %869 = vmatpush1.xpose.msra.mxu0 0.0
  %870 = vmatprep.subr.mxu0 0.0
  %871 = vmatpush1.xpose.msra.mxu0 0.0
  %872 = vmatprep.subr.mxu0 0.0
  %873 = vmatpush1.xpose.msra.mxu0 0.0
  %874 = vmatprep.subr.mxu0 0.0
  %875 = vmatpush1.xpose.msra.mxu0 0.0
  %876 = vmatprep.subr.mxu0 0.0
  %877 = vmatpush1.xpose.msra.mxu0 0.0
  %878 = vmatprep.subr.mxu0 0.0
  %879 = vmatpush1.xpose.msra.mxu0 0.0
  %880 = vmatprep.subr.mxu0 0.0
  %881 = vmatpush1.xpose.msra.mxu0 0.0
  %882 = vmatprep.mubr.f32.mxu0 0.0
  %883 = vmatmul.mubr.f32.gmra.mrb[0].mxu0 %v814
  %v884 = vpop.f32.mrb[0].mxu0
  %v885 = vadd.f32 0.0, %v884
  %v886 = vpop.f32.mrb[0].mxu0
  %887 = vdwg.mxu0
  %888 = vrot.lane.b32.xlu0 %v321, 96
  %v889 = vpop.permute.xlu0 %888
  %v890 = vsel %vm433, %v321, 0
  %v892 = vsel %vm433, %v889, 0
  %894 = vmatprep.subr.mxu0 0.0
  %895 = vmatpush1.xpose.msra.mxu0 %v892
  %896 = vmatprep.subr.mxu0 0.0
  %897 = vmatpush1.xpose.msra.mxu0 0.0
  %898 = vmatprep.subr.mxu0 0.0
  %899 = vmatpush1.xpose.msra.mxu0 0.0
  %900 = vmatprep.subr.mxu0 0.0
  %901 = vmatpush1.xpose.msra.mxu0 0.0
  %902 = vmatprep.subr.mxu0 0.0
  %903 = vmatpush1.xpose.msra.mxu0 0.0
  %904 = vmatprep.subr.mxu0 0.0
  %905 = vmatpush1.xpose.msra.mxu0 0.0
  %906 = vmatprep.subr.mxu0 0.0
  %907 = vmatpush1.xpose.msra.mxu0 0.0
  %908 = vmatprep.subr.mxu0 0.0
  %909 = vmatpush1.xpose.msra.mxu0 0.0
  %910 = vmatprep.subr.mxu0 0.0
  %911 = vmatpush1.xpose.msra.mxu0 0.0
  %912 = vmatprep.subr.mxu0 0.0
  %913 = vmatpush1.xpose.msra.mxu0 0.0
  %914 = vmatprep.subr.mxu0 0.0
  %915 = vmatpush1.xpose.msra.mxu0 0.0
  %916 = vmatprep.subr.mxu0 0.0
  %917 = vmatpush1.xpose.msra.mxu0 0.0
  %918 = vmatprep.subr.mxu0 0.0
  %919 = vmatpush1.xpose.msra.mxu0 0.0
  %920 = vmatprep.subr.mxu0 0.0
  %921 = vmatpush1.xpose.msra.mxu0 0.0
  %922 = vmatprep.subr.mxu0 0.0
  %923 = vmatpush1.xpose.msra.mxu0 0.0
  %924 = vmatprep.subr.mxu0 0.0
  %925 = vmatpush1.xpose.msra.mxu0 0.0
  %926 = vmatprep.subr.mxu0 0.0
  %927 = vmatpush1.xpose.msra.mxu0 0.0
  %928 = vmatprep.subr.mxu0 0.0
  %929 = vmatpush1.xpose.msra.mxu0 0.0
  %930 = vmatprep.subr.mxu0 0.0
  %931 = vmatpush1.xpose.msra.mxu0 0.0
  %932 = vmatprep.subr.mxu0 0.0
  %933 = vmatpush1.xpose.msra.mxu0 0.0
  %934 = vmatprep.subr.mxu0 0.0
  %935 = vmatpush1.xpose.msra.mxu0 0.0
  %936 = vmatprep.subr.mxu0 0.0
  %937 = vmatpush1.xpose.msra.mxu0 0.0
  %938 = vmatprep.subr.mxu0 0.0
  %939 = vmatpush1.xpose.msra.mxu0 0.0
  %940 = vmatprep.subr.mxu0 0.0
  %941 = vmatpush1.xpose.msra.mxu0 0.0
  %942 = vmatprep.subr.mxu0 0.0
  %943 = vmatpush1.xpose.msra.mxu0 0.0
  %944 = vmatprep.subr.mxu0 0.0
  %945 = vmatpush1.xpose.msra.mxu0 0.0
  %946 = vmatprep.subr.mxu0 0.0
  %947 = vmatpush1.xpose.msra.mxu0 0.0
  %948 = vmatprep.subr.mxu0 0.0
  %949 = vmatpush1.xpose.msra.mxu0 0.0
  %950 = vmatprep.subr.mxu0 0.0
  %951 = vmatpush1.xpose.msra.mxu0 0.0
  %952 = vmatprep.subr.mxu0 0.0
  %953 = vmatpush1.xpose.msra.mxu0 0.0
  %954 = vmatprep.subr.mxu0 0.0
  %955 = vmatpush1.xpose.msra.mxu0 0.0
  %956 = vmatprep.subr.mxu0 0.0
  %957 = vmatpush1.xpose.msra.mxu0 0.0
  %958 = vmatprep.mubr.f32.mxu0 0.0
  %959 = vmatmul.mubr.f32.gmra.mrb[0].mxu0 %v890
  %v960 = vpop.f32.mrb[0].mxu0
  %v961 = vadd.f32 0.0, %v960
  %v962 = vpop.f32.mrb[0].mxu0
  %963 = vdwg.mxu0
  %964 = vrot.lane.b32.xlu0 %v323, 96
  %v965 = vpop.permute.xlu0 %964
  %v966 = vsel %vm433, %v323, 0
  %v968 = vsel %vm433, %v965, 0
  %970 = vmatprep.subr.mxu0 0.0
  %971 = vmatpush1.xpose.msra.mxu0 %v968
  %972 = vmatprep.subr.mxu0 0.0
  %973 = vmatpush1.xpose.msra.mxu0 0.0
  %974 = vmatprep.subr.mxu0 0.0
  %975 = vmatpush1.xpose.msra.mxu0 0.0
  %976 = vmatprep.subr.mxu0 0.0
  %977 = vmatpush1.xpose.msra.mxu0 0.0
  %978 = vmatprep.subr.mxu0 0.0
  %979 = vmatpush1.xpose.msra.mxu0 0.0
  %980 = vmatprep.subr.mxu0 0.0
  %981 = vmatpush1.xpose.msra.mxu0 0.0
  %982 = vmatprep.subr.mxu0 0.0
  %983 = vmatpush1.xpose.msra.mxu0 0.0
  %984 = vmatprep.subr.mxu0 0.0
  %985 = vmatpush1.xpose.msra.mxu0 0.0
  %986 = vmatprep.subr.mxu0 0.0
  %987 = vmatpush1.xpose.msra.mxu0 0.0
  %988 = vmatprep.subr.mxu0 0.0
  %989 = vmatpush1.xpose.msra.mxu0 0.0
  %990 = vmatprep.subr.mxu0 0.0
  %991 = vmatpush1.xpose.msra.mxu0 0.0
  %992 = vmatprep.subr.mxu0 0.0
  %993 = vmatpush1.xpose.msra.mxu0 0.0
  %994 = vmatprep.subr.mxu0 0.0
  %995 = vmatpush1.xpose.msra.mxu0 0.0
  %996 = vmatprep.subr.mxu0 0.0
  %997 = vmatpush1.xpose.msra.mxu0 0.0
  %998 = vmatprep.subr.mxu0 0.0
  %999 = vmatpush1.xpose.msra.mxu0 0.0
  %1000 = vmatprep.subr.mxu0 0.0
  %1001 = vmatpush1.xpose.msra.mxu0 0.0
  %1002 = vmatprep.subr.mxu0 0.0
  %1003 = vmatpush1.xpose.msra.mxu0 0.0
  %1004 = vmatprep.subr.mxu0 0.0
  %1005 = vmatpush1.xpose.msra.mxu0 0.0
  %1006 = vmatprep.subr.mxu0 0.0
  %1007 = vmatpush1.xpose.msra.mxu0 0.0
  %1008 = vmatprep.subr.mxu0 0.0
  %1009 = vmatpush1.xpose.msra.mxu0 0.0
  %1010 = vmatprep.subr.mxu0 0.0
  %1011 = vmatpush1.xpose.msra.mxu0 0.0
  %1012 = vmatprep.subr.mxu0 0.0
  %1013 = vmatpush1.xpose.msra.mxu0 0.0
  %1014 = vmatprep.subr.mxu0 0.0
  %1015 = vmatpush1.xpose.msra.mxu0 0.0
  %1016 = vmatprep.subr.mxu0 0.0
  %1017 = vmatpush1.xpose.msra.mxu0 0.0
  %1018 = vmatprep.subr.mxu0 0.0
  %1019 = vmatpush1.xpose.msra.mxu0 0.0
  %1020 = vmatprep.subr.mxu0 0.0
  %1021 = vmatpush1.xpose.msra.mxu0 0.0
  %1022 = vmatprep.subr.mxu0 0.0
  %1023 = vmatpush1.xpose.msra.mxu0 0.0
  %1024 = vmatprep.subr.mxu0 0.0
  %1025 = vmatpush1.xpose.msra.mxu0 0.0
  %1026 = vmatprep.subr.mxu0 0.0
  %1027 = vmatpush1.xpose.msra.mxu0 0.0
  %1028 = vmatprep.subr.mxu0 0.0
  %1029 = vmatpush1.xpose.msra.mxu0 0.0
  %1030 = vmatprep.subr.mxu0 0.0
  %1031 = vmatpush1.xpose.msra.mxu0 0.0
  %1032 = vmatprep.subr.mxu0 0.0
  %1033 = vmatpush1.xpose.msra.mxu0 0.0
  %1034 = vmatprep.mubr.f32.mxu0 0.0
  %1035 = vmatmul.mubr.f32.gmra.mrb[0].mxu0 %v966
  %v1036 = vpop.f32.mrb[0].mxu0
  %v1037 = vadd.f32 0.0, %v1036
  %v1038 = vpop.f32.mrb[0].mxu0
  %1039 = vdwg.mxu0
  %v1040 = vmul.f32 %v505, 0.35355338
  %v1041 = vmul.f32 %v581, 0.35355338
  %v1042 = vmul.f32 %v657, 0.35355338
  %v1043 = vmul.f32 %v733, 0.35355338
  %v1044 = vmul.f32 %v809, 0.35355338
  %v1045 = vmul.f32 %v885, 0.35355338
  %v1046 = vmul.f32 %v961, 0.35355338
  %v1047 = vmul.f32 %v1037, 0.35355338
  %v1048 = vadd.f32 %v1040, %v394
  %v1049 = vadd.f32 %v1041, %v398
  %v1050 = vadd.f32 %v1042, %v402
  %v1051 = vadd.f32 %v1043, %v406
  %v1052 = vadd.f32 %v1044, %v410
  %v1053 = vadd.f32 %v1045, %v414
  %v1054 = vadd.f32 %v1046, %v418
  %v1055 = vadd.f32 %v1047, %v422
  %v1056 = vsel %vm433, %v1048, -inf
  %1057 = vmax.xlane.f32.xlu0 %v1056
  %v1058 = vpop.xlane.xlu0 %1057
  %v1059 = vsel %vm433, %v1049, -inf
  %1060 = vmax.xlane.f32.xlu0 %v1059
  %v1061 = vpop.xlane.xlu0 %1060
  %v1062 = vsel %vm433, %v1050, -inf
  %1063 = vmax.xlane.f32.xlu0 %v1062
  %v1064 = vpop.xlane.xlu0 %1063
  %v1065 = vsel %vm433, %v1051, -inf
  %1066 = vmax.xlane.f32.xlu0 %v1065
  %v1067 = vpop.xlane.xlu0 %1066
  %v1068 = vsel %vm433, %v1052, -inf
  %1069 = vmax.xlane.f32.xlu0 %v1068
  %v1070 = vpop.xlane.xlu0 %1069
  %v1071 = vsel %vm433, %v1053, -inf
  %1072 = vmax.xlane.f32.xlu0 %v1071
  %v1073 = vpop.xlane.xlu0 %1072
  %v1074 = vsel %vm433, %v1054, -inf
  %1075 = vmax.xlane.f32.xlu0 %v1074
  %v1076 = vpop.xlane.xlu0 %1075
  %v1077 = vsel %vm433, %v1055, -inf
  %1078 = vmax.xlane.f32.xlu0 %v1077
  %v1079 = vpop.xlane.xlu0 %1078
  %v1080 = vsub.f32 %v1048, %v1058
  %v1081 = vsub.f32 %v1049, %v1061
  %v1082 = vsub.f32 %v1050, %v1064
  %v1083 = vsub.f32 %v1051, %v1067
  %v1084 = vsub.f32 %v1052, %v1070
  %v1085 = vsub.f32 %v1053, %v1073
  %v1086 = vsub.f32 %v1054, %v1076
  %v1087 = vsub.f32 %v1055, %v1079
  %v1088 = vmul.f32 %v1080, 1.442695
  %v1089 = vpow.pop %v1088
  %v1090 = vmul.f32 %v1081, 1.442695
  %v1091 = vpow.pop %v1090
  %v1092 = vmul.f32 %v1082, 1.442695
  %v1093 = vpow.pop %v1092
  %v1094 = vmul.f32 %v1083, 1.442695
  %v1095 = vpow.pop %v1094
  %v1096 = vmul.f32 %v1084, 1.442695
  %v1097 = vpow.pop %v1096
  %v1098 = vmul.f32 %v1085, 1.442695
  %v1099 = vpow.pop %v1098
  %v1100 = vmul.f32 %v1086, 1.442695
  %v1101 = vpow.pop %v1100
  %v1102 = vmul.f32 %v1087, 1.442695
  %v1103 = vpow.pop %v1102
  %v1104 = vsel %vm433, %v1089, 0.0
  %1105 = vadd.xlane.f32.xlu0 %v1104
  %v1106 = vpop.xlane.xlu0 %1105
  %v1107 = vsel %vm433, %v1091, 0.0
  %1108 = vadd.xlane.f32.xlu0 %v1107
  %v1109 = vpop.xlane.xlu0 %1108
  %v1110 = vsel %vm433, %v1093, 0.0
  %1111 = vadd.xlane.f32.xlu0 %v1110
  %v1112 = vpop.xlane.xlu0 %1111
  %v1113 = vsel %vm433, %v1095, 0.0
  %1114 = vadd.xlane.f32.xlu0 %v1113
  %v1115 = vpop.xlane.xlu0 %1114
  %v1116 = vsel %vm433, %v1097, 0.0
  %1117 = vadd.xlane.f32.xlu0 %v1116
  %v1118 = vpop.xlane.xlu0 %1117
  %v1119 = vsel %vm433, %v1099, 0.0
  %1120 = vadd.xlane.f32.xlu0 %v1119
  %v1121 = vpop.xlane.xlu0 %1120
  %v1122 = vsel %vm433, %v1101, 0.0
  %1123 = vadd.xlane.f32.xlu0 %v1122
  %v1124 = vpop.xlane.xlu0 %1123
  %v1125 = vsel %vm433, %v1103, 0.0
  %1126 = vadd.xlane.f32.xlu0 %v1125
  %v1127 = vpop.xlane.xlu0 %1126
  %v1128 = vrcp.pop %v1106
  %v1129 = vmul.f32 %v1089, %v1128
  %v1130 = vrcp.pop %v1109
  %v1131 = vmul.f32 %v1091, %v1130
  %v1132 = vrcp.pop %v1112
  %v1133 = vmul.f32 %v1093, %v1132
  %v1134 = vrcp.pop %v1115
  %v1135 = vmul.f32 %v1095, %v1134
  %v1136 = vrcp.pop %v1118
  %v1137 = vmul.f32 %v1097, %v1136
  %v1138 = vrcp.pop %v1121
  %v1139 = vmul.f32 %v1099, %v1138
  %v1140 = vrcp.pop %v1124
  %v1141 = vmul.f32 %v1101, %v1140
  %v1142 = vrcp.pop %v1127
  %v1143 = vmul.f32 %v1103, %v1142
  %1144 = vrot.lane.b32.xlu0 %v302, 64
  %v1145 = vpop.permute.xlu0 %1144
  %v1148 = vsel %vm433, %v1129, 0
  %1150 = vmatprep.subr.mxu0 0.0
  %1151 = vmatpush1.msra.mxu0 %v1145
  %1152 = vmatprep.subr.mxu0 0.0
  %1153 = vmatpush1.msra.mxu0 0.0
  %1154 = vmatprep.subr.mxu0 0.0
  %1155 = vmatpush1.msra.mxu0 0.0
  %1156 = vmatprep.subr.mxu0 0.0
  %1157 = vmatpush1.msra.mxu0 0.0
  %1158 = vmatprep.subr.mxu0 0.0
  %1159 = vmatpush1.msra.mxu0 0.0
  %1160 = vmatprep.subr.mxu0 0.0
  %1161 = vmatpush1.msra.mxu0 0.0
  %1162 = vmatprep.subr.mxu0 0.0
  %1163 = vmatpush1.msra.mxu0 0.0
  %1164 = vmatprep.subr.mxu0 0.0
  %1165 = vmatpush1.msra.mxu0 0.0
  %1166 = vmatprep.subr.mxu0 0.0
  %1167 = vmatpush1.msra.mxu0 0.0
  %1168 = vmatprep.subr.mxu0 0.0
  %1169 = vmatpush1.msra.mxu0 0.0
  %1170 = vmatprep.subr.mxu0 0.0
  %1171 = vmatpush1.msra.mxu0 0.0
  %1172 = vmatprep.subr.mxu0 0.0
  %1173 = vmatpush1.msra.mxu0 0.0
  %1174 = vmatprep.subr.mxu0 0.0
  %1175 = vmatpush1.msra.mxu0 0.0
  %1176 = vmatprep.subr.mxu0 0.0
  %1177 = vmatpush1.msra.mxu0 0.0
  %1178 = vmatprep.subr.mxu0 0.0
  %1179 = vmatpush1.msra.mxu0 0.0
  %1180 = vmatprep.subr.mxu0 0.0
  %1181 = vmatpush1.msra.mxu0 0.0
  %1182 = vmatprep.subr.mxu0 0.0
  %1183 = vmatpush1.msra.mxu0 0.0
  %1184 = vmatprep.subr.mxu0 0.0
  %1185 = vmatpush1.msra.mxu0 0.0
  %1186 = vmatprep.subr.mxu0 0.0
  %1187 = vmatpush1.msra.mxu0 0.0
  %1188 = vmatprep.subr.mxu0 0.0
  %1189 = vmatpush1.msra.mxu0 0.0
  %1190 = vmatprep.subr.mxu0 0.0
  %1191 = vmatpush1.msra.mxu0 0.0
  %1192 = vmatprep.subr.mxu0 0.0
  %1193 = vmatpush1.msra.mxu0 0.0
  %1194 = vmatprep.subr.mxu0 0.0
  %1195 = vmatpush1.msra.mxu0 0.0
  %1196 = vmatprep.subr.mxu0 0.0
  %1197 = vmatpush1.msra.mxu0 0.0
  %1198 = vmatprep.subr.mxu0 0.0
  %1199 = vmatpush1.msra.mxu0 0.0
  %1200 = vmatprep.subr.mxu0 0.0
  %1201 = vmatpush1.msra.mxu0 0.0
  %1202 = vmatprep.subr.mxu0 0.0
  %1203 = vmatpush1.msra.mxu0 0.0
  %1204 = vmatprep.subr.mxu0 0.0
  %1205 = vmatpush1.msra.mxu0 0.0
  %1206 = vmatprep.subr.mxu0 0.0
  %1207 = vmatpush1.msra.mxu0 0.0
  %1208 = vmatprep.subr.mxu0 0.0
  %1209 = vmatpush1.msra.mxu0 0.0
  %1210 = vmatprep.subr.mxu0 0.0
  %1211 = vmatpush1.msra.mxu0 0.0
  %1212 = vmatprep.subr.mxu0 0.0
  %1213 = vmatpush1.msra.mxu0 0.0
  %1214 = vmatprep.mubr.f32.mxu0 0.0
  %1215 = vmatmul.mubr.f32.gmra.mrb[0].mxu0 %v1148
  %v1216 = vpop.f32.mrb[0].mxu0
  %v1217 = vadd.f32 0.0, %v1216
  %v1218 = vpop.f32.mrb[0].mxu0
  %1219 = vdwg.mxu0
  %1220 = vrot.lane.b32.xlu0 %v307, 64
  %v1221 = vpop.permute.xlu0 %1220
  %v1224 = vsel %vm433, %v1131, 0
  %1226 = vmatprep.subr.mxu0 0.0
  %1227 = vmatpush1.msra.mxu0 %v1221
  %1228 = vmatprep.subr.mxu0 0.0
  %1229 = vmatpush1.msra.mxu0 0.0
  %1230 = vmatprep.subr.mxu0 0.0
  %1231 = vmatpush1.msra.mxu0 0.0
  %1232 = vmatprep.subr.mxu0 0.0
  %1233 = vmatpush1.msra.mxu0 0.0
  %1234 = vmatprep.subr.mxu0 0.0
  %1235 = vmatpush1.msra.mxu0 0.0
  %1236 = vmatprep.subr.mxu0 0.0
  %1237 = vmatpush1.msra.mxu0 0.0
  %1238 = vmatprep.subr.mxu0 0.0
  %1239 = vmatpush1.msra.mxu0 0.0
  %1240 = vmatprep.subr.mxu0 0.0
  %1241 = vmatpush1.msra.mxu0 0.0
  %1242 = vmatprep.subr.mxu0 0.0
  %1243 = vmatpush1.msra.mxu0 0.0
  %1244 = vmatprep.subr.mxu0 0.0
  %1245 = vmatpush1.msra.mxu0 0.0
  %1246 = vmatprep.subr.mxu0 0.0
  %1247 = vmatpush1.msra.mxu0 0.0
  %1248 = vmatprep.subr.mxu0 0.0
  %1249 = vmatpush1.msra.mxu0 0.0
  %1250 = vmatprep.subr.mxu0 0.0
  %1251 = vmatpush1.msra.mxu0 0.0
  %1252 = vmatprep.subr.mxu0 0.0
  %1253 = vmatpush1.msra.mxu0 0.0
  %1254 = vmatprep.subr.mxu0 0.0
  %1255 = vmatpush1.msra.mxu0 0.0
  %1256 = vmatprep.subr.mxu0 0.0
  %1257 = vmatpush1.msra.mxu0 0.0
  %1258 = vmatprep.subr.mxu0 0.0
  %1259 = vmatpush1.msra.mxu0 0.0
  %1260 = vmatprep.subr.mxu0 0.0
  %1261 = vmatpush1.msra.mxu0 0.0
  %1262 = vmatprep.subr.mxu0 0.0
  %1263 = vmatpush1.msra.mxu0 0.0
  %1264 = vmatprep.subr.mxu0 0.0
  %1265 = vmatpush1.msra.mxu0 0.0
  %1266 = vmatprep.subr.mxu0 0.0
  %1267 = vmatpush1.msra.mxu0 0.0
  %1268 = vmatprep.subr.mxu0 0.0
  %1269 = vmatpush1.msra.mxu0 0.0
  %1270 = vmatprep.subr.mxu0 0.0
  %1271 = vmatpush1.msra.mxu0 0.0
  %1272 = vmatprep.subr.mxu0 0.0
  %1273 = vmatpush1.msra.mxu0 0.0
  %1274 = vmatprep.subr.mxu0 0.0
  %1275 = vmatpush1.msra.mxu0 0.0
  %1276 = vmatprep.subr.mxu0 0.0
  %1277 = vmatpush1.msra.mxu0 0.0
  %1278 = vmatprep.subr.mxu0 0.0
  %1279 = vmatpush1.msra.mxu0 0.0
  %1280 = vmatprep.subr.mxu0 0.0
  %1281 = vmatpush1.msra.mxu0 0.0
  %1282 = vmatprep.subr.mxu0 0.0
  %1283 = vmatpush1.msra.mxu0 0.0
  %1284 = vmatprep.subr.mxu0 0.0
  %1285 = vmatpush1.msra.mxu0 0.0
  %1286 = vmatprep.subr.mxu0 0.0
  %1287 = vmatpush1.msra.mxu0 0.0
  %1288 = vmatprep.subr.mxu0 0.0
  %1289 = vmatpush1.msra.mxu0 0.0
  %1290 = vmatprep.mubr.f32.mxu0 0.0
  %1291 = vmatmul.mubr.f32.gmra.mrb[0].mxu0 %v1224
  %v1292 = vpop.f32.mrb[0].mxu0
  %v1293 = vadd.f32 0.0, %v1292
  %v1294 = vpop.f32.mrb[0].mxu0
  %1295 = vdwg.mxu0
  %1296 = vrot.lane.b32.xlu0 %v313, 64
  %v1297 = vpop.permute.xlu0 %1296
  %v1300 = vsel %vm433, %v1133, 0
  %1302 = vmatprep.subr.mxu0 0.0
  %1303 = vmatpush1.msra.mxu0 %v1297
  %1304 = vmatprep.subr.mxu0 0.0
  %1305 = vmatpush1.msra.mxu0 0.0
  %1306 = vmatprep.subr.mxu0 0.0
  %1307 = vmatpush1.msra.mxu0 0.0
  %1308 = vmatprep.subr.mxu0 0.0
  %1309 = vmatpush1.msra.mxu0 0.0
  %1310 = vmatprep.subr.mxu0 0.0
  %1311 = vmatpush1.msra.mxu0 0.0
  %1312 = vmatprep.subr.mxu0 0.0
  %1313 = vmatpush1.msra.mxu0 0.0
  %1314 = vmatprep.subr.mxu0 0.0
  %1315 = vmatpush1.msra.mxu0 0.0
  %1316 = vmatprep.subr.mxu0 0.0
  %1317 = vmatpush1.msra.mxu0 0.0
  %1318 = vmatprep.subr.mxu0 0.0
  %1319 = vmatpush1.msra.mxu0 0.0
  %1320 = vmatprep.subr.mxu0 0.0
  %1321 = vmatpush1.msra.mxu0 0.0
  %1322 = vmatprep.subr.mxu0 0.0
  %1323 = vmatpush1.msra.mxu0 0.0
  %1324 = vmatprep.subr.mxu0 0.0
  %1325 = vmatpush1.msra.mxu0 0.0
  %1326 = vmatprep.subr.mxu0 0.0
  %1327 = vmatpush1.msra.mxu0 0.0
  %1328 = vmatprep.subr.mxu0 0.0
  %1329 = vmatpush1.msra.mxu0 0.0
  %1330 = vmatprep.subr.mxu0 0.0
  %1331 = vmatpush1.msra.mxu0 0.0
  %1332 = vmatprep.subr.mxu0 0.0
  %1333 = vmatpush1.msra.mxu0 0.0
  %1334 = vmatprep.subr.mxu0 0.0
  %1335 = vmatpush1.msra.mxu0 0.0
  %1336 = vmatprep.subr.mxu0 0.0
  %1337 = vmatpush1.msra.mxu0 0.0
  %1338 = vmatprep.subr.mxu0 0.0
  %1339 = vmatpush1.msra.mxu0 0.0
  %1340 = vmatprep.subr.mxu0 0.0
  %1341 = vmatpush1.msra.mxu0 0.0
  %1342 = vmatprep.subr.mxu0 0.0
  %1343 = vmatpush1.msra.mxu0 0.0
  %1344 = vmatprep.subr.mxu0 0.0
  %1345 = vmatpush1.msra.mxu0 0.0
  %1346 = vmatprep.subr.mxu0 0.0
  %1347 = vmatpush1.msra.mxu0 0.0
  %1348 = vmatprep.subr.mxu0 0.0
  %1349 = vmatpush1.msra.mxu0 0.0
  %1350 = vmatprep.subr.mxu0 0.0
  %1351 = vmatpush1.msra.mxu0 0.0
  %1352 = vmatprep.subr.mxu0 0.0
  %1353 = vmatpush1.msra.mxu0 0.0
  %1354 = vmatprep.subr.mxu0 0.0
  %1355 = vmatpush1.msra.mxu0 0.0
  %1356 = vmatprep.subr.mxu0 0.0
  %1357 = vmatpush1.msra.mxu0 0.0
  %1358 = vmatprep.subr.mxu0 0.0
  %1359 = vmatpush1.msra.mxu0 0.0
  %1360 = vmatprep.subr.mxu0 0.0
  %1361 = vmatpush1.msra.mxu0 0.0
  %1362 = vmatprep.subr.mxu0 0.0
  %1363 = vmatpush1.msra.mxu0 0.0
  %1364 = vmatprep.subr.mxu0 0.0
  %1365 = vmatpush1.msra.mxu0 0.0
  %1366 = vmatprep.mubr.f32.mxu0 0.0
  %1367 = vmatmul.mubr.f32.gmra.mrb[0].mxu0 %v1300
  %v1368 = vpop.f32.mrb[0].mxu0
  %v1369 = vadd.f32 0.0, %v1368
  %v1370 = vpop.f32.mrb[0].mxu0
  %1371 = vdwg.mxu0
  %1372 = vrot.lane.b32.xlu0 %v315, 64
  %v1373 = vpop.permute.xlu0 %1372
  %v1376 = vsel %vm433, %v1135, 0
  %1378 = vmatprep.subr.mxu0 0.0
  %1379 = vmatpush1.msra.mxu0 %v1373
  %1380 = vmatprep.subr.mxu0 0.0
  %1381 = vmatpush1.msra.mxu0 0.0
  %1382 = vmatprep.subr.mxu0 0.0
  %1383 = vmatpush1.msra.mxu0 0.0
  %1384 = vmatprep.subr.mxu0 0.0
  %1385 = vmatpush1.msra.mxu0 0.0
  %1386 = vmatprep.subr.mxu0 0.0
  %1387 = vmatpush1.msra.mxu0 0.0
  %1388 = vmatprep.subr.mxu0 0.0
  %1389 = vmatpush1.msra.mxu0 0.0
  %1390 = vmatprep.subr.mxu0 0.0
  %1391 = vmatpush1.msra.mxu0 0.0
  %1392 = vmatprep.subr.mxu0 0.0
  %1393 = vmatpush1.msra.mxu0 0.0
  %1394 = vmatprep.subr.mxu0 0.0
  %1395 = vmatpush1.msra.mxu0 0.0
  %1396 = vmatprep.subr.mxu0 0.0
  %1397 = vmatpush1.msra.mxu0 0.0
  %1398 = vmatprep.subr.mxu0 0.0
  %1399 = vmatpush1.msra.mxu0 0.0
  %1400 = vmatprep.subr.mxu0 0.0
  %1401 = vmatpush1.msra.mxu0 0.0
  %1402 = vmatprep.subr.mxu0 0.0
  %1403 = vmatpush1.msra.mxu0 0.0
  %1404 = vmatprep.subr.mxu0 0.0
  %1405 = vmatpush1.msra.mxu0 0.0
  %1406 = vmatprep.subr.mxu0 0.0
  %1407 = vmatpush1.msra.mxu0 0.0
  %1408 = vmatprep.subr.mxu0 0.0
  %1409 = vmatpush1.msra.mxu0 0.0
  %1410 = vmatprep.subr.mxu0 0.0
  %1411 = vmatpush1.msra.mxu0 0.0
  %1412 = vmatprep.subr.mxu0 0.0
  %1413 = vmatpush1.msra.mxu0 0.0
  %1414 = vmatprep.subr.mxu0 0.0
  %1415 = vmatpush1.msra.mxu0 0.0
  %1416 = vmatprep.subr.mxu0 0.0
  %1417 = vmatpush1.msra.mxu0 0.0
  %1418 = vmatprep.subr.mxu0 0.0
  %1419 = vmatpush1.msra.mxu0 0.0
  %1420 = vmatprep.subr.mxu0 0.0
  %1421 = vmatpush1.msra.mxu0 0.0
  %1422 = vmatprep.subr.mxu0 0.0
  %1423 = vmatpush1.msra.mxu0 0.0
  %1424 = vmatprep.subr.mxu0 0.0
  %1425 = vmatpush1.msra.mxu0 0.0
  %1426 = vmatprep.subr.mxu0 0.0
  %1427 = vmatpush1.msra.mxu0 0.0
  %1428 = vmatprep.subr.mxu0 0.0
  %1429 = vmatpush1.msra.mxu0 0.0
  %1430 = vmatprep.subr.mxu0 0.0
  %1431 = vmatpush1.msra.mxu0 0.0
  %1432 = vmatprep.subr.mxu0 0.0
  %1433 = vmatpush1.msra.mxu0 0.0
  %1434 = vmatprep.subr.mxu0 0.0
  %1435 = vmatpush1.msra.mxu0 0.0
  %1436 = vmatprep.subr.mxu0 0.0
  %1437 = vmatpush1.msra.mxu0 0.0
  %1438 = vmatprep.subr.mxu0 0.0
  %1439 = vmatpush1.msra.mxu0 0.0
  %1440 = vmatprep.subr.mxu0 0.0
  %1441 = vmatpush1.msra.mxu0 0.0
  %1442 = vmatprep.mubr.f32.mxu0 0.0
  %1443 = vmatmul.mubr.f32.gmra.mrb[0].mxu0 %v1376
  %v1444 = vpop.f32.mrb[0].mxu0
  %v1445 = vadd.f32 0.0, %v1444
  %v1446 = vpop.f32.mrb[0].mxu0
  %1447 = vdwg.mxu0
  %1448 = vrot.lane.b32.xlu0 %v317, 64
  %v1449 = vpop.permute.xlu0 %1448
  %v1452 = vsel %vm433, %v1137, 0
  %1454 = vmatprep.subr.mxu0 0.0
  %1455 = vmatpush1.msra.mxu0 %v1449
  %1456 = vmatprep.subr.mxu0 0.0
  %1457 = vmatpush1.msra.mxu0 0.0
  %1458 = vmatprep.subr.mxu0 0.0
  %1459 = vmatpush1.msra.mxu0 0.0
  %1460 = vmatprep.subr.mxu0 0.0
  %1461 = vmatpush1.msra.mxu0 0.0
  %1462 = vmatprep.subr.mxu0 0.0
  %1463 = vmatpush1.msra.mxu0 0.0
  %1464 = vmatprep.subr.mxu0 0.0
  %1465 = vmatpush1.msra.mxu0 0.0
  %1466 = vmatprep.subr.mxu0 0.0
  %1467 = vmatpush1.msra.mxu0 0.0
  %1468 = vmatprep.subr.mxu0 0.0
  %1469 = vmatpush1.msra.mxu0 0.0
  %1470 = vmatprep.subr.mxu0 0.0
  %1471 = vmatpush1.msra.mxu0 0.0
  %1472 = vmatprep.subr.mxu0 0.0
  %1473 = vmatpush1.msra.mxu0 0.0
  %1474 = vmatprep.subr.mxu0 0.0
  %1475 = vmatpush1.msra.mxu0 0.0
  %1476 = vmatprep.subr.mxu0 0.0
  %1477 = vmatpush1.msra.mxu0 0.0
  %1478 = vmatprep.subr.mxu0 0.0
  %1479 = vmatpush1.msra.mxu0 0.0
  %1480 = vmatprep.subr.mxu0 0.0
  %1481 = vmatpush1.msra.mxu0 0.0
  %1482 = vmatprep.subr.mxu0 0.0
  %1483 = vmatpush1.msra.mxu0 0.0
  %1484 = vmatprep.subr.mxu0 0.0
  %1485 = vmatpush1.msra.mxu0 0.0
  %1486 = vmatprep.subr.mxu0 0.0
  %1487 = vmatpush1.msra.mxu0 0.0
  %1488 = vmatprep.subr.mxu0 0.0
  %1489 = vmatpush1.msra.mxu0 0.0
  %1490 = vmatprep.subr.mxu0 0.0
  %1491 = vmatpush1.msra.mxu0 0.0
  %1492 = vmatprep.subr.mxu0 0.0
  %1493 = vmatpush1.msra.mxu0 0.0
  %1494 = vmatprep.subr.mxu0 0.0
  %1495 = vmatpush1.msra.mxu0 0.0
  %1496 = vmatprep.subr.mxu0 0.0
  %1497 = vmatpush1.msra.mxu0 0.0
  %1498 = vmatprep.subr.mxu0 0.0
  %1499 = vmatpush1.msra.mxu0 0.0
  %1500 = vmatprep.subr.mxu0 0.0
  %1501 = vmatpush1.msra.mxu0 0.0
  %1502 = vmatprep.subr.mxu0 0.0
  %1503 = vmatpush1.msra.mxu0 0.0
  %1504 = vmatprep.subr.mxu0 0.0
  %1505 = vmatpush1.msra.mxu0 0.0
  %1506 = vmatprep.subr.mxu0 0.0
  %1507 = vmatpush1.msra.mxu0 0.0
  %1508 = vmatprep.subr.mxu0 0.0
  %1509 = vmatpush1.msra.mxu0 0.0
  %1510 = vmatprep.subr.mxu0 0.0
  %1511 = vmatpush1.msra.mxu0 0.0
  %1512 = vmatprep.subr.mxu0 0.0
  %1513 = vmatpush1.msra.mxu0 0.0
  %1514 = vmatprep.subr.mxu0 0.0
  %1515 = vmatpush1.msra.mxu0 0.0
  %1516 = vmatprep.subr.mxu0 0.0
  %1517 = vmatpush1.msra.mxu0 0.0
  %1518 = vmatprep.mubr.f32.mxu0 0.0
  %1519 = vmatmul.mubr.f32.gmra.mrb[0].mxu0 %v1452
  %v1520 = vpop.f32.mrb[0].mxu0
  %v1521 = vadd.f32 0.0, %v1520
  %v1522 = vpop.f32.mrb[0].mxu0
  %1523 = vdwg.mxu0
  %1524 = vrot.lane.b32.xlu0 %v319, 64
  %v1525 = vpop.permute.xlu0 %1524
  %v1528 = vsel %vm433, %v1139, 0
  %1530 = vmatprep.subr.mxu0 0.0
  %1531 = vmatpush1.msra.mxu0 %v1525
  %1532 = vmatprep.subr.mxu0 0.0
  %1533 = vmatpush1.msra.mxu0 0.0
  %1534 = vmatprep.subr.mxu0 0.0
  %1535 = vmatpush1.msra.mxu0 0.0
  %1536 = vmatprep.subr.mxu0 0.0
  %1537 = vmatpush1.msra.mxu0 0.0
  %1538 = vmatprep.subr.mxu0 0.0
  %1539 = vmatpush1.msra.mxu0 0.0
  %1540 = vmatprep.subr.mxu0 0.0
  %1541 = vmatpush1.msra.mxu0 0.0
  %1542 = vmatprep.subr.mxu0 0.0
  %1543 = vmatpush1.msra.mxu0 0.0
  %1544 = vmatprep.subr.mxu0 0.0
  %1545 = vmatpush1.msra.mxu0 0.0
  %1546 = vmatprep.subr.mxu0 0.0
  %1547 = vmatpush1.msra.mxu0 0.0
  %1548 = vmatprep.subr.mxu0 0.0
  %1549 = vmatpush1.msra.mxu0 0.0
  %1550 = vmatprep.subr.mxu0 0.0
  %1551 = vmatpush1.msra.mxu0 0.0
  %1552 = vmatprep.subr.mxu0 0.0
  %1553 = vmatpush1.msra.mxu0 0.0
  %1554 = vmatprep.subr.mxu0 0.0
  %1555 = vmatpush1.msra.mxu0 0.0
  %1556 = vmatprep.subr.mxu0 0.0
  %1557 = vmatpush1.msra.mxu0 0.0
  %1558 = vmatprep.subr.mxu0 0.0
  %1559 = vmatpush1.msra.mxu0 0.0
  %1560 = vmatprep.subr.mxu0 0.0
  %1561 = vmatpush1.msra.mxu0 0.0
  %1562 = vmatprep.subr.mxu0 0.0
  %1563 = vmatpush1.msra.mxu0 0.0
  %1564 = vmatprep.subr.mxu0 0.0
  %1565 = vmatpush1.msra.mxu0 0.0
  %1566 = vmatprep.subr.mxu0 0.0
  %1567 = vmatpush1.msra.mxu0 0.0
  %1568 = vmatprep.subr.mxu0 0.0
  %1569 = vmatpush1.msra.mxu0 0.0
  %1570 = vmatprep.subr.mxu0 0.0
  %1571 = vmatpush1.msra.mxu0 0.0
  %1572 = vmatprep.subr.mxu0 0.0
  %1573 = vmatpush1.msra.mxu0 0.0
  %1574 = vmatprep.subr.mxu0 0.0
  %1575 = vmatpush1.msra.mxu0 0.0
  %1576 = vmatprep.subr.mxu0 0.0
  %1577 = vmatpush1.msra.mxu0 0.0
  %1578 = vmatprep.subr.mxu0 0.0
  %1579 = vmatpush1.msra.mxu0 0.0
  %1580 = vmatprep.subr.mxu0 0.0
  %1581 = vmatpush1.msra.mxu0 0.0
  %1582 = vmatprep.subr.mxu0 0.0
  %1583 = vmatpush1.msra.mxu0 0.0
  %1584 = vmatprep.subr.mxu0 0.0
  %1585 = vmatpush1.msra.mxu0 0.0
  %1586 = vmatprep.subr.mxu0 0.0
  %1587 = vmatpush1.msra.mxu0 0.0
  %1588 = vmatprep.subr.mxu0 0.0
  %1589 = vmatpush1.msra.mxu0 0.0
  %1590 = vmatprep.subr.mxu0 0.0
  %1591 = vmatpush1.msra.mxu0 0.0
  %1592 = vmatprep.subr.mxu0 0.0
  %1593 = vmatpush1.msra.mxu0 0.0
  %1594 = vmatprep.mubr.f32.mxu0 0.0
  %1595 = vmatmul.mubr.f32.gmra.mrb[0].mxu0 %v1528
  %v1596 = vpop.f32.mrb[0].mxu0
  %v1597 = vadd.f32 0.0, %v1596
  %v1598 = vpop.f32.mrb[0].mxu0
  %1599 = vdwg.mxu0
  %1600 = vrot.lane.b32.xlu0 %v321, 64
  %v1601 = vpop.permute.xlu0 %1600
  %v1604 = vsel %vm433, %v1141, 0
  %1606 = vmatprep.subr.mxu0 0.0
  %1607 = vmatpush1.msra.mxu0 %v1601
  %1608 = vmatprep.subr.mxu0 0.0
  %1609 = vmatpush1.msra.mxu0 0.0
  %1610 = vmatprep.subr.mxu0 0.0
  %1611 = vmatpush1.msra.mxu0 0.0
  %1612 = vmatprep.subr.mxu0 0.0
  %1613 = vmatpush1.msra.mxu0 0.0
  %1614 = vmatprep.subr.mxu0 0.0
  %1615 = vmatpush1.msra.mxu0 0.0
  %1616 = vmatprep.subr.mxu0 0.0
  %1617 = vmatpush1.msra.mxu0 0.0
  %1618 = vmatprep.subr.mxu0 0.0
  %1619 = vmatpush1.msra.mxu0 0.0
  %1620 = vmatprep.subr.mxu0 0.0
  %1621 = vmatpush1.msra.mxu0 0.0
  %1622 = vmatprep.subr.mxu0 0.0
  %1623 = vmatpush1.msra.mxu0 0.0
  %1624 = vmatprep.subr.mxu0 0.0
  %1625 = vmatpush1.msra.mxu0 0.0
  %1626 = vmatprep.subr.mxu0 0.0
  %1627 = vmatpush1.msra.mxu0 0.0
  %1628 = vmatprep.subr.mxu0 0.0
  %1629 = vmatpush1.msra.mxu0 0.0
  %1630 = vmatprep.subr.mxu0 0.0
  %1631 = vmatpush1.msra.mxu0 0.0
  %1632 = vmatprep.subr.mxu0 0.0
  %1633 = vmatpush1.msra.mxu0 0.0
  %1634 = vmatprep.subr.mxu0 0.0
  %1635 = vmatpush1.msra.mxu0 0.0
  %1636 = vmatprep.subr.mxu0 0.0
  %1637 = vmatpush1.msra.mxu0 0.0
  %1638 = vmatprep.subr.mxu0 0.0
  %1639 = vmatpush1.msra.mxu0 0.0
  %1640 = vmatprep.subr.mxu0 0.0
  %1641 = vmatpush1.msra.mxu0 0.0
  %1642 = vmatprep.subr.mxu0 0.0
  %1643 = vmatpush1.msra.mxu0 0.0
  %1644 = vmatprep.subr.mxu0 0.0
  %1645 = vmatpush1.msra.mxu0 0.0
  %1646 = vmatprep.subr.mxu0 0.0
  %1647 = vmatpush1.msra.mxu0 0.0
  %1648 = vmatprep.subr.mxu0 0.0
  %1649 = vmatpush1.msra.mxu0 0.0
  %1650 = vmatprep.subr.mxu0 0.0
  %1651 = vmatpush1.msra.mxu0 0.0
  %1652 = vmatprep.subr.mxu0 0.0
  %1653 = vmatpush1.msra.mxu0 0.0
  %1654 = vmatprep.subr.mxu0 0.0
  %1655 = vmatpush1.msra.mxu0 0.0
  %1656 = vmatprep.subr.mxu0 0.0
  %1657 = vmatpush1.msra.mxu0 0.0
  %1658 = vmatprep.subr.mxu0 0.0
  %1659 = vmatpush1.msra.mxu0 0.0
  %1660 = vmatprep.subr.mxu0 0.0
  %1661 = vmatpush1.msra.mxu0 0.0
  %1662 = vmatprep.subr.mxu0 0.0
  %1663 = vmatpush1.msra.mxu0 0.0
  %1664 = vmatprep.subr.mxu0 0.0
  %1665 = vmatpush1.msra.mxu0 0.0
  %1666 = vmatprep.subr.mxu0 0.0
  %1667 = vmatpush1.msra.mxu0 0.0
  %1668 = vmatprep.subr.mxu0 0.0
  %1669 = vmatpush1.msra.mxu0 0.0
  %1670 = vmatprep.mubr.f32.mxu0 0.0
  %1671 = vmatmul.mubr.f32.gmra.mrb[0].mxu0 %v1604
  %v1672 = vpop.f32.mrb[0].mxu0
  %v1673 = vadd.f32 0.0, %v1672
  %v1674 = vpop.f32.mrb[0].mxu0
  %1675 = vdwg.mxu0
  %1676 = vrot.lane.b32.xlu0 %v323, 64
  %v1677 = vpop.permute.xlu0 %1676
  %v1680 = vsel %vm433, %v1143, 0
  %1682 = vmatprep.subr.mxu0 0.0
  %1683 = vmatpush1.msra.mxu0 %v1677
  %1684 = vmatprep.subr.mxu0 0.0
  %1685 = vmatpush1.msra.mxu0 0.0
  %1686 = vmatprep.subr.mxu0 0.0
  %1687 = vmatpush1.msra.mxu0 0.0
  %1688 = vmatprep.subr.mxu0 0.0
  %1689 = vmatpush1.msra.mxu0 0.0
  %1690 = vmatprep.subr.mxu0 0.0
  %1691 = vmatpush1.msra.mxu0 0.0
  %1692 = vmatprep.subr.mxu0 0.0
  %1693 = vmatpush1.msra.mxu0 0.0
  %1694 = vmatprep.subr.mxu0 0.0
  %1695 = vmatpush1.msra.mxu0 0.0
  %1696 = vmatprep.subr.mxu0 0.0
  %1697 = vmatpush1.msra.mxu0 0.0
  %1698 = vmatprep.subr.mxu0 0.0
  %1699 = vmatpush1.msra.mxu0 0.0
  %1700 = vmatprep.subr.mxu0 0.0
  %1701 = vmatpush1.msra.mxu0 0.0
  %1702 = vmatprep.subr.mxu0 0.0
  %1703 = vmatpush1.msra.mxu0 0.0
  %1704 = vmatprep.subr.mxu0 0.0
  %1705 = vmatpush1.msra.mxu0 0.0
  %1706 = vmatprep.subr.mxu0 0.0
  %1707 = vmatpush1.msra.mxu0 0.0
  %1708 = vmatprep.subr.mxu0 0.0
  %1709 = vmatpush1.msra.mxu0 0.0
  %1710 = vmatprep.subr.mxu0 0.0
  %1711 = vmatpush1.msra.mxu0 0.0
  %1712 = vmatprep.subr.mxu0 0.0
  %1713 = vmatpush1.msra.mxu0 0.0
  %1714 = vmatprep.subr.mxu0 0.0
  %1715 = vmatpush1.msra.mxu0 0.0
  %1716 = vmatprep.subr.mxu0 0.0
  %1717 = vmatpush1.msra.mxu0 0.0
  %1718 = vmatprep.subr.mxu0 0.0
  %1719 = vmatpush1.msra.mxu0 0.0
  %1720 = vmatprep.subr.mxu0 0.0
  %1721 = vmatpush1.msra.mxu0 0.0
  %1722 = vmatprep.subr.mxu0 0.0
  %1723 = vmatpush1.msra.mxu0 0.0
  %1724 = vmatprep.subr.mxu0 0.0
  %1725 = vmatpush1.msra.mxu0 0.0
  %1726 = vmatprep.subr.mxu0 0.0
  %1727 = vmatpush1.msra.mxu0 0.0
  %1728 = vmatprep.subr.mxu0 0.0
  %1729 = vmatpush1.msra.mxu0 0.0
  %1730 = vmatprep.subr.mxu0 0.0
  %1731 = vmatpush1.msra.mxu0 0.0
  %1732 = vmatprep.subr.mxu0 0.0
  %1733 = vmatpush1.msra.mxu0 0.0
  %1734 = vmatprep.subr.mxu0 0.0
  %1735 = vmatpush1.msra.mxu0 0.0
  %1736 = vmatprep.subr.mxu0 0.0
  %1737 = vmatpush1.msra.mxu0 0.0
  %1738 = vmatprep.subr.mxu0 0.0
  %1739 = vmatpush1.msra.mxu0 0.0
  %1740 = vmatprep.subr.mxu0 0.0
  %1741 = vmatpush1.msra.mxu0 0.0
  %1742 = vmatprep.subr.mxu0 0.0
  %1743 = vmatpush1.msra.mxu0 0.0
  %1744 = vmatprep.subr.mxu0 0.0
  %1745 = vmatpush1.msra.mxu0 0.0
  %1746 = vmatprep.mubr.f32.mxu0 0.0
  %1747 = vmatmul.mubr.f32.gmra.mrb[0].mxu0 %v1680
  %v1748 = vpop.f32.mrb[0].mxu0
  %v1749 = vadd.f32 0.0, %v1748
  %v1750 = vpop.f32.mrb[0].mxu0
  %1751 = vdwg.mxu0
  %1754 = vrot.lane.b32.xlu0 %v1369, 8
  %v1755 = vpop.permute.xlu0 %1754
  %1756 = vrot.lane.b32.xlu0 %v1445, 8
  %v1757 = vpop.permute.xlu0 %1756
  %1762 = vrot.lane.b32.xlu0 %v1521, 16
  %v1763 = vpop.permute.xlu0 %1762
  %1764 = vrot.lane.b32.xlu0 %v1597, 16
  %v1765 = vpop.permute.xlu0 %1764
  %1770 = vrot.lane.b32.xlu0 %v1673, 24
  %v1771 = vpop.permute.xlu0 %1770
  %1772 = vrot.lane.b32.xlu0 %v1749, 24
  %v1773 = vpop.permute.xlu0 %1772
  %v1776 = vsel %vm433, %v1217, %v1755
  %v1777 = vsel %vm433, %v1293, %v1757
  %vm1778 = vcmask 130048
  %v1779 = vsel %vm1778, %v1776, %v1763
  %v1780 = vsel %vm1778, %v1777, %v1765
  %vm1781 = vcmask 195584
  %v1782 = vsel %vm1781, %v1779, %v1771
  %v1783 = vsel %vm1781, %v1780, %v1773
  %v1784 = vld [vmem:[%s3 + $0x30] sm:$0xff]
  %v1785 = vld [vmem:[%s3 + $0x38] sm:$0xff]
  %v1786 = vld [vmem:[%s3 + $0x40] sm:$0xff]
  %v1787 = vld [vmem:[%s3 + $0x48] sm:$0xff]
  %v1788 = vld [vmem:[%s3 + $0x50] sm:$0x1]
  %v1789 = vlaneseq
  %v1790 = vshrl.u32 %v1789, 7
  %v1791 = vsub.s32 0, %v1790
  %v1792 = vrot.slane %v1788, %v1791
  %v1794 = vsel %vm180, %v1782, 0
  %v1797 = vsel %vm180, %v1783, 0
  %1799 = vmatprep.subr.mxu0 0.0
  %1800 = vmatpush1.msra.mxu0 %v1784
  %1801 = vmatprep.subr.mxu0 0.0
  %1802 = vmatpush1.msra.mxu0 %v1785
  %1803 = vmatprep.subr.mxu0 0.0
  %1804 = vmatpush1.msra.mxu0 %v1786
  %1805 = vmatprep.subr.mxu0 0.0
  %1806 = vmatpush1.msra.mxu0 %v1787
  %1807 = vmatprep.subr.mxu0 0.0
  %1808 = vmatpush1.msra.mxu0 0.0
  %1809 = vmatprep.subr.mxu0 0.0
  %1810 = vmatpush1.msra.mxu0 0.0
  %1811 = vmatprep.subr.mxu0 0.0
  %1812 = vmatpush1.msra.mxu0 0.0
  %1813 = vmatprep.subr.mxu0 0.0
  %1814 = vmatpush1.msra.mxu0 0.0
  %1815 = vmatprep.subr.mxu0 0.0
  %1816 = vmatpush1.msra.mxu0 0.0
  %1817 = vmatprep.subr.mxu0 0.0
  %1818 = vmatpush1.msra.mxu0 0.0
  %1819 = vmatprep.subr.mxu0 0.0
  %1820 = vmatpush1.msra.mxu0 0.0
  %1821 = vmatprep.subr.mxu0 0.0
  %1822 = vmatpush1.msra.mxu0 0.0
  %1823 = vmatprep.subr.mxu0 0.0
  %1824 = vmatpush1.msra.mxu0 0.0
  %1825 = vmatprep.subr.mxu0 0.0
  %1826 = vmatpush1.msra.mxu0 0.0
  %1827 = vmatprep.subr.mxu0 0.0
  %1828 = vmatpush1.msra.mxu0 0.0
  %1829 = vmatprep.subr.mxu0 0.0
  %1830 = vmatpush1.msra.mxu0 0.0
  %1831 = vmatprep.subr.mxu0 0.0
  %1832 = vmatpush1.msra.mxu0 0.0
  %1833 = vmatprep.subr.mxu0 0.0
  %1834 = vmatpush1.msra.mxu0 0.0
  %1835 = vmatprep.subr.mxu0 0.0
  %1836 = vmatpush1.msra.mxu0 0.0
  %1837 = vmatprep.subr.mxu0 0.0
  %1838 = vmatpush1.msra.mxu0 0.0
  %1839 = vmatprep.subr.mxu0 0.0
  %1840 = vmatpush1.msra.mxu0 0.0
  %1841 = vmatprep.subr.mxu0 0.0
  %1842 = vmatpush1.msra.mxu0 0.0
  %1843 = vmatprep.subr.mxu0 0.0
  %1844 = vmatpush1.msra.mxu0 0.0
  %1845 = vmatprep.subr.mxu0 0.0
  %1846 = vmatpush1.msra.mxu0 0.0
  %1847 = vmatprep.subr.mxu0 0.0
  %1848 = vmatpush1.msra.mxu0 0.0
  %1849 = vmatprep.subr.mxu0 0.0
  %1850 = vmatpush1.msra.mxu0 0.0
  %1851 = vmatprep.subr.mxu0 0.0
  %1852 = vmatpush1.msra.mxu0 0.0
  %1853 = vmatprep.subr.mxu0 0.0
  %1854 = vmatpush1.msra.mxu0 0.0
  %1855 = vmatprep.subr.mxu0 0.0
  %1856 = vmatpush1.msra.mxu0 0.0
  %1857 = vmatprep.subr.mxu0 0.0
  %1858 = vmatpush1.msra.mxu0 0.0
  %1859 = vmatprep.subr.mxu0 0.0
  %1860 = vmatpush1.msra.mxu0 0.0
  %1861 = vmatprep.subr.mxu0 0.0
  %1862 = vmatpush1.msra.mxu0 0.0
  %1863 = vmatprep.mubr.f32.mxu0 0.0
  %1864 = vmatmul.mubr.f32.gmra.mrb[0].mxu0 %v1794
  %v1865 = vpop.f32.mrb[0].mxu0
  %v1866 = vadd.f32 %v1792, %v1865
  %v1867 = vpop.f32.mrb[0].mxu0
  %1868 = vmatprep.mubr.f32.mxu0 0.0
  %1869 = vmatmul.mubr.f32.gmra.mrb[0].mxu0 %v1797
  %v1870 = vpop.f32.mrb[0].mxu0
  %v1871 = vadd.f32 %v1792, %v1870
  %v1872 = vpop.f32.mrb[0].mxu0
  %1873 = vdwg.mxu0
  %v1874 = vadd.f32 %v218, %v1866
  %v1875 = vadd.f32 %v219, %v1871
  %v1876 = vld [vmem:[%s3 + $0x2] sm:$0x1]
  %v1877 = vld [vmem:[%s3 + $0x3] sm:$0x1]
  %v1878 = vsel %vm180, %v1874, 0.0
  %1879 = vadd.xlane.f32.xlu0 %v1878
  %v1880 = vpop.xlane.xlu0 %1879
  %v1881 = vsel %vm180, %v1875, 0.0
  %1882 = vadd.xlane.f32.xlu0 %v1881
  %v1883 = vpop.xlane.xlu0 %1882
  %v1884 = vmul.f32 %v1880, %v187
  %v1885 = vmul.f32 %v1883, %v187
  %v1886 = vsub.f32 %v1874, %v1884
  %v1887 = vsub.f32 %v1875, %v1885
  %v1888 = vmul.f32 %v1886, %v1886
  %v1889 = vmul.f32 %v1887, %v1887
  %v1890 = vsel %vm180, %v1888, 0.0
  %1891 = vadd.xlane.f32.xlu0 %v1890
  %v1892 = vpop.xlane.xlu0 %1891
  %v1893 = vsel %vm180, %v1889, 0.0
  %1894 = vadd.xlane.f32.xlu0 %v1893
  %v1895 = vpop.xlane.xlu0 %1894
  %v1896 = vmul.f32 %v1892, %v187
  %v1897 = vmul.f32 %v1895, %v187
  %v1898 = vadd.f32 %v1896, 1e-12
  %v1899 = vadd.f32 %v1897, 1e-12
  %v1900 = vrsqrt.pop %v1898
  %v1901 = vrsqrt.pop %v1899
  %v1902 = vmul.f32 %v1886, %v1900
  %v1903 = vmul.f32 %v1887, %v1901
  %v1904 = vlaneseq
  %v1905 = vshrl.u32 %v1904, 7
  %v1906 = vsub.s32 0, %v1905
  %v1907 = vrot.slane %v1876, %v1906
  %v1908 = vmul.f32 %v1902, %v1907
  %v1909 = vmul.f32 %v1903, %v1907
  %v1910 = vlaneseq
  %v1911 = vshrl.u32 %v1910, 7
  %v1912 = vsub.s32 0, %v1911
  %v1913 = vrot.slane %v1877, %v1912
  %v1914 = vadd.f32 %v1908, %v1913
  %v1915 = vadd.f32 %v1909, %v1913
  %v1916 = vld [vmem:[%s3 + $0x58] sm:$0xff]
  %v1917 = vld [vmem:[%s3 + $0x60] sm:$0xff]
  %v1918 = vld [vmem:[%s3 + $0x68] sm:$0xff]
  %v1919 = vld [vmem:[%s3 + $0x70] sm:$0xff]
  %v1920 = vld [vmem:[%s3 + $0x78] sm:$0x1]
  %v1921 = vlaneseq
  %v1922 = vshrl.u32 %v1921, 7
  %v1923 = vsub.s32 0, %v1922
  %v1924 = vrot.slane %v1920, %v1923
  %v1926 = vsel %vm180, %v1914, 0
  %v1929 = vsel %vm180, %v1915, 0
  %1931 = vmatprep.subr.mxu0 0.0
  %1932 = vmatpush1.msra.mxu0 %v1916
  %1933 = vmatprep.subr.mxu0 0.0
  %1934 = vmatpush1.msra.mxu0 %v1917
  %1935 = vmatprep.subr.mxu0 0.0
  %1936 = vmatpush1.msra.mxu0 %v1918
  %1937 = vmatprep.subr.mxu0 0.0
  %1938 = vmatpush1.msra.mxu0 %v1919
  %1939 = vmatprep.subr.mxu0 0.0
  %1940 = vmatpush1.msra.mxu0 0.0
  %1941 = vmatprep.subr.mxu0 0.0
  %1942 = vmatpush1.msra.mxu0 0.0
  %1943 = vmatprep.subr.mxu0 0.0
  %1944 = vmatpush1.msra.mxu0 0.0
  %1945 = vmatprep.subr.mxu0 0.0
  %1946 = vmatpush1.msra.mxu0 0.0
  %1947 = vmatprep.subr.mxu0 0.0
  %1948 = vmatpush1.msra.mxu0 0.0
  %1949 = vmatprep.subr.mxu0 0.0
  %1950 = vmatpush1.msra.mxu0 0.0
  %1951 = vmatprep.subr.mxu0 0.0
  %1952 = vmatpush1.msra.mxu0 0.0
  %1953 = vmatprep.subr.mxu0 0.0
  %1954 = vmatpush1.msra.mxu0 0.0
  %1955 = vmatprep.subr.mxu0 0.0
  %1956 = vmatpush1.msra.mxu0 0.0
  %1957 = vmatprep.subr.mxu0 0.0
  %1958 = vmatpush1.msra.mxu0 0.0
  %1959 = vmatprep.subr.mxu0 0.0
  %1960 = vmatpush1.msra.mxu0 0.0
  %1961 = vmatprep.subr.mxu0 0.0
  %1962 = vmatpush1.msra.mxu0 0.0
  %1963 = vmatprep.subr.mxu0 0.0
  %1964 = vmatpush1.msra.mxu0 0.0
  %1965 = vmatprep.subr.mxu0 0.0
  %1966 = vmatpush1.msra.mxu0 0.0
  %1967 = vmatprep.subr.mxu0 0.0
  %1968 = vmatpush1.msra.mxu0 0.0
  %1969 = vmatprep.subr.mxu0 0.0
  %1970 = vmatpush1.msra.mxu0 0.0
  %1971 = vmatprep.subr.mxu0 0.0
  %1972 = vmatpush1.msra.mxu0 0.0
  %1973 = vmatprep.subr.mxu0 0.0
  %1974 = vmatpush1.msra.mxu0 0.0
  %1975 = vmatprep.subr.mxu0 0.0
  %1976 = vmatpush1.msra.mxu0 0.0
  %1977 = vmatprep.subr.mxu0 0.0
  %1978 = vmatpush1.msra.mxu0 0.0
  %1979 = vmatprep.subr.mxu0 0.0
  %1980 = vmatpush1.msra.mxu0 0.0
  %1981 = vmatprep.subr.mxu0 0.0
  %1982 = vmatpush1.msra.mxu0 0.0
  %1983 = vmatprep.subr.mxu0 0.0
  %1984 = vmatpush1.msra.mxu0 0.0
  %1985 = vmatprep.subr.mxu0 0.0
  %1986 = vmatpush1.msra.mxu0 0.0
  %1987 = vmatprep.subr.mxu0 0.0
  %1988 = vmatpush1.msra.mxu0 0.0
  %1989 = vmatprep.subr.mxu0 0.0
  %1990 = vmatpush1.msra.mxu0 0.0
  %1991 = vmatprep.subr.mxu0 0.0
  %1992 = vmatpush1.msra.mxu0 0.0
  %1993 = vmatprep.subr.mxu0 0.0
  %1994 = vmatpush1.msra.mxu0 0.0
  %1995 = vmatprep.mubr.f32.mxu0 0.0
  %1996 = vmatmul.mubr.f32.gmra.mrb[0].mxu0 %v1926
  %v1997 = vpop.f32.mrb[0].mxu0
  %v1998 = vadd.f32 %v1924, %v1997
  %v1999 = vpop.f32.mrb[0].mxu0
  %2000 = vmatprep.mubr.f32.mxu0 0.0
  %2001 = vmatmul.mubr.f32.gmra.mrb[0].mxu0 %v1929
  %v2002 = vpop.f32.mrb[0].mxu0
  %v2003 = vadd.f32 %v1924, %v2002
  %v2004 = vpop.f32.mrb[0].mxu0
  %2005 = vdwg.mxu0
  %v2006 = vmul.f32 %v1998, 0.5
  %v2007 = vmul.f32 %v2003, 0.5
  %v2008 = vmul.f32 %v1998, 0.044715
  %v2009 = vmul.f32 %v2003, 0.044715
  %v2010 = vmul.f32 %v2008, %v1998
  %v2011 = vmul.f32 %v2009, %v2003
  %v2012 = vmul.f32 %v2010, %v1998
  %v2013 = vmul.f32 %v2011, %v2003
  %v2014 = vadd.f32 %v1998, %v2012
  %v2015 = vadd.f32 %v2003, %v2013
  %v2016 = vmul.f32 %v2014, 0.7978846
  %v2017 = vmul.f32 %v2015, 0.7978846
  %v2018 = vtanh.pop %v2016
  %v2019 = vtanh.pop %v2017
  %v2020 = vadd.f32 %v2018, 1.0
  %v2021 = vadd.f32 %v2019, 1.0
  %v2022 = vmul.f32 %v2006, %v2020
  %v2023 = vmul.f32 %v2007, %v2021
  %v2024 = vld [vmem:[%s3 + $0x80] sm:$0xff]
  %v2025 = vld [vmem:[%s3 + $0x88] sm:$0xff]
  %v2026 = vld [vmem:[%s3 + $0x90] sm:$0xff]
  %v2027 = vld [vmem:[%s3 + $0x98] sm:$0xff]
  %v2028 = vld [vmem:[%s3 + $0xa0] sm:$0xff]
  %v2029 = vld [vmem:[%s3 + $0xa8] sm:$0xff]
  %v2030 = vld [vmem:[%s3 + $0xb0] sm:$0xff]
  %v2031 = vld [vmem:[%s3 + $0xb8] sm:$0xff]
  %v2032 = vld [vmem:[%s3 + $0xc0] sm:$0x1]
  %v2033 = vlaneseq
  %v2034 = vshrl.u32 %v2033, 7
  %v2035 = vsub.s32 0, %v2034
  %v2036 = vrot.slane %v2032, %v2035
  %vm2037 = vcmask 523264
  %v2039 = vsel %vm2037, %v2022, 0
  %v2042 = vsel %vm2037, %v2023, 0
  %2044 = vmatprep.subr.mxu0 0.0
  %2045 = vmatpush1.msra.mxu0 %v2024
  %2046 = vmatprep.subr.mxu0 0.0
  %2047 = vmatpush1.msra.mxu0 %v2025
  %2048 = vmatprep.subr.mxu0 0.0
  %2049 = vmatpush1.msra.mxu0 %v2026
  %2050 = vmatprep.subr.mxu0 0.0
  %2051 = vmatpush1.msra.mxu0 %v2027
  %2052 = vmatprep.subr.mxu0 0.0
  %2053 = vmatpush1.msra.mxu0 %v2028
  %2054 = vmatprep.subr.mxu0 0.0
  %2055 = vmatpush1.msra.mxu0 %v2029
  %2056 = vmatprep.subr.mxu0 0.0
  %2057 = vmatpush1.msra.mxu0 %v2030
  %2058 = vmatprep.subr.mxu0 0.0
  %2059 = vmatpush1.msra.mxu0 %v2031
  %2060 = vmatprep.subr.mxu0 0.0
  %2061 = vmatpush1.msra.mxu0 0.0
  %2062 = vmatprep.subr.mxu0 0.0
  %2063 = vmatpush1.msra.mxu0 0.0
  %2064 = vmatprep.subr.mxu0 0.0
  %2065 = vmatpush1.msra.mxu0 0.0
  %2066 = vmatprep.subr.mxu0 0.0
  %2067 = vmatpush1.msra.mxu0 0.0
  %2068 = vmatprep.subr.mxu0 0.0
  %2069 = vmatpush1.msra.mxu0 0.0
  %2070 = vmatprep.subr.mxu0 0.0
  %2071 = vmatpush1.msra.mxu0 0.0
  %2072 = vmatprep.subr.mxu0 0.0
  %2073 = vmatpush1.msra.mxu0 0.0
  %2074 = vmatprep.subr.mxu0 0.0
  %2075 = vmatpush1.msra.mxu0 0.0
  %2076 = vmatprep.subr.mxu0 0.0
  %2077 = vmatpush1.msra.mxu0 0.0
  %2078 = vmatprep.subr.mxu0 0.0
  %2079 = vmatpush1.msra.mxu0 0.0
  %2080 = vmatprep.subr.mxu0 0.0
  %2081 = vmatpush1.msra.mxu0 0.0
  %2082 = vmatprep.subr.mxu0 0.0
  %2083 = vmatpush1.msra.mxu0 0.0
  %2084 = vmatprep.subr.mxu0 0.0
  %2085 = vmatpush1.msra.mxu0 0.0
  %2086 = vmatprep.subr.mxu0 0.0
  %2087 = vmatpush1.msra.mxu0 0.0
  %2088 = vmatprep.subr.mxu0 0.0
  %2089 = vmatpush1.msra.mxu0 0.0
  %2090 = vmatprep.subr.mxu0 0.0
  %2091 = vmatpush1.msra.mxu0 0.0
  %2092 = vmatprep.subr.mxu0 0.0
  %2093 = vmatpush1.msra.mxu0 0.0
  %2094 = vmatprep.subr.mxu0 0.0
  %2095 = vmatpush1.msra.mxu0 0.0
  %2096 = vmatprep.subr.mxu0 0.0
  %2097 = vmatpush1.msra.mxu0 0.0
  %2098 = vmatprep.subr.mxu0 0.0
  %2099 = vmatpush1.msra.mxu0 0.0
  %2100 = vmatprep.subr.mxu0 0.0
  %2101 = vmatpush1.msra.mxu0 0.0
  %2102 = vmatprep.subr.mxu0 0.0
  %2103 = vmatpush1.msra.mxu0 0.0
  %2104 = vmatprep.subr.mxu0 0.0
  %2105 = vmatpush1.msra.mxu0 0.0
  %2106 = vmatprep.subr.mxu0 0.0
  %2107 = vmatpush1.msra.mxu0 0.0
  %2108 = vmatprep.mubr.f32.mxu0 0.0
  %2109 = vmatmul.mubr.f32.gmra.mrb[0].mxu0 %v2039
  %v2110 = vpop.f32.mrb[0].mxu0
  %v2111 = vadd.f32 %v2036, %v2110
  %v2112 = vpop.f32.mrb[0].mxu0
  %2113 = vmatprep.mubr.f32.mxu0 0.0
  %2114 = vmatmul.mubr.f32.gmra.mrb[0].mxu0 %v2042
  %v2115 = vpop.f32.mrb[0].mxu0
  %v2116 = vadd.f32 %v2036, %v2115
  %v2117 = vpop.f32.mrb[0].mxu0
  %2118 = vdwg.mxu0
  %v2119 = vadd.f32 %v1914, %v2111
  %v2120 = vadd.f32 %v1915, %v2116
  %v2121 = vld [vmem:[%s3 + $0x4] sm:$0x1]
  %v2122 = vld [vmem:[%s3 + $0x5] sm:$0x1]
  %v2123 = vsel %vm180, %v2119, 0.0
  %2124 = vadd.xlane.f32.xlu0 %v2123
  %v2125 = vpop.xlane.xlu0 %2124
  %v2126 = vsel %vm180, %v2120, 0.0
  %2127 = vadd.xlane.f32.xlu0 %v2126
  %v2128 = vpop.xlane.xlu0 %2127
  %v2129 = vmul.f32 %v2125, %v187
  %v2130 = vmul.f32 %v2128, %v187
  %v2131 = vsub.f32 %v2119, %v2129
  %v2132 = vsub.f32 %v2120, %v2130
  %v2133 = vmul.f32 %v2131, %v2131
  %v2134 = vmul.f32 %v2132, %v2132
  %v2135 = vsel %vm180, %v2133, 0.0
  %2136 = vadd.xlane.f32.xlu0 %v2135
  %v2137 = vpop.xlane.xlu0 %2136
  %v2138 = vsel %vm180, %v2134, 0.0
  %2139 = vadd.xlane.f32.xlu0 %v2138
  %v2140 = vpop.xlane.xlu0 %2139
  %v2141 = vmul.f32 %v2137, %v187
  %v2142 = vmul.f32 %v2140, %v187
  %v2143 = vadd.f32 %v2141, 1e-12
  %v2144 = vadd.f32 %v2142, 1e-12
  %v2145 = vrsqrt.pop %v2143
  %v2146 = vrsqrt.pop %v2144
  %v2147 = vmul.f32 %v2131, %v2145
  %v2148 = vmul.f32 %v2132, %v2146
  %v2149 = vlaneseq
  %v2150 = vshrl.u32 %v2149, 7
  %v2151 = vsub.s32 0, %v2150
  %v2152 = vrot.slane %v2121, %v2151
  %v2153 = vmul.f32 %v2147, %v2152
  %v2154 = vmul.f32 %v2148, %v2152
  %v2155 = vlaneseq
  %v2156 = vshrl.u32 %v2155, 7
  %v2157 = vsub.s32 0, %v2156
  %v2158 = vrot.slane %v2122, %v2157
  %v2159 = vadd.f32 %v2153, %v2158
  %v2160 = vadd.f32 %v2154, %v2158
  %v2161 = vld [vmem:[%s3 + $0xc8] sm:$0xff]
  %v2162 = vld [vmem:[%s3 + $0xd0] sm:$0xff]
  %v2163 = vld [vmem:[%s3 + $0xd8] sm:$0xff]
  %v2164 = vld [vmem:[%s3 + $0xe0] sm:$0xff]
  %v2165 = vld [vmem:[%s3 + $0xe8] sm:$0x1]
  %v2166 = vlaneseq
  %v2167 = vshrl.u32 %v2166, 7
  %v2168 = vsub.s32 0, %v2167
  %v2169 = vrot.slane %v2165, %v2168
  %v2171 = vsel %vm180, %v2159, 0
  %v2174 = vsel %vm180, %v2160, 0
  %2176 = vmatprep.subr.mxu0 0.0
  %2177 = vmatpush1.msra.mxu0 %v2161
  %2178 = vmatprep.subr.mxu0 0.0
  %2179 = vmatpush1.msra.mxu0 %v2162
  %2180 = vmatprep.subr.mxu0 0.0
  %2181 = vmatpush1.msra.mxu0 %v2163
  %2182 = vmatprep.subr.mxu0 0.0
  %2183 = vmatpush1.msra.mxu0 %v2164
  %2184 = vmatprep.subr.mxu0 0.0
  %2185 = vmatpush1.msra.mxu0 0.0
  %2186 = vmatprep.subr.mxu0 0.0
  %2187 = vmatpush1.msra.mxu0 0.0
  %2188 = vmatprep.subr.mxu0 0.0
  %2189 = vmatpush1.msra.mxu0 0.0
  %2190 = vmatprep.subr.mxu0 0.0
  %2191 = vmatpush1.msra.mxu0 0.0
  %2192 = vmatprep.subr.mxu0 0.0
  %2193 = vmatpush1.msra.mxu0 0.0
  %2194 = vmatprep.subr.mxu0 0.0
  %2195 = vmatpush1.msra.mxu0 0.0
  %2196 = vmatprep.subr.mxu0 0.0
  %2197 = vmatpush1.msra.mxu0 0.0
  %2198 = vmatprep.subr.mxu0 0.0
  %2199 = vmatpush1.msra.mxu0 0.0
  %2200 = vmatprep.subr.mxu0 0.0
  %2201 = vmatpush1.msra.mxu0 0.0
  %2202 = vmatprep.subr.mxu0 0.0
  %2203 = vmatpush1.msra.mxu0 0.0
  %2204 = vmatprep.subr.mxu0 0.0
  %2205 = vmatpush1.msra.mxu0 0.0
  %2206 = vmatprep.subr.mxu0 0.0
  %2207 = vmatpush1.msra.mxu0 0.0
  %2208 = vmatprep.subr.mxu0 0.0
  %2209 = vmatpush1.msra.mxu0 0.0
  %2210 = vmatprep.subr.mxu0 0.0
  %2211 = vmatpush1.msra.mxu0 0.0
  %2212 = vmatprep.subr.mxu0 0.0
  %2213 = vmatpush1.msra.mxu0 0.0
  %2214 = vmatprep.subr.mxu0 0.0
  %2215 = vmatpush1.msra.mxu0 0.0
  %2216 = vmatprep.subr.mxu0 0.0
  %2217 = vmatpush1.msra.mxu0 0.0
  %2218 = vmatprep.subr.mxu0 0.0
  %2219 = vmatpush1.msra.mxu0 0.0
  %2220 = vmatprep.subr.mxu0 0.0
  %2221 = vmatpush1.msra.mxu0 0.0
  %2222 = vmatprep.subr.mxu0 0.0
  %2223 = vmatpush1.msra.mxu0 0.0
  %2224 = vmatprep.subr.mxu0 0.0
  %2225 = vmatpush1.msra.mxu0 0.0
  %2226 = vmatprep.subr.mxu0 0.0
  %2227 = vmatpush1.msra.mxu0 0.0
  %2228 = vmatprep.subr.mxu0 0.0
  %2229 = vmatpush1.msra.mxu0 0.0
  %2230 = vmatprep.subr.mxu0 0.0
  %2231 = vmatpush1.msra.mxu0 0.0
  %2232 = vmatprep.subr.mxu0 0.0
  %2233 = vmatpush1.msra.mxu0 0.0
  %2234 = vmatprep.subr.mxu0 0.0
  %2235 = vmatpush1.msra.mxu0 0.0
  %2236 = vmatprep.subr.mxu0 0.0
  %2237 = vmatpush1.msra.mxu0 0.0
  %2238 = vmatprep.subr.mxu0 0.0
  %2239 = vmatpush1.msra.mxu0 0.0
  %2240 = vmatprep.mubr.f32.mxu0 0.0
  %2241 = vmatmul.mubr.f32.gmra.mrb[0].mxu0 %v2171
  %v2242 = vpop.f32.mrb[0].mxu0
  %v2243 = vadd.f32 %v2169, %v2242
  %v2244 = vpop.f32.mrb[0].mxu0
  %2245 = vmatprep.mubr.f32.mxu0 0.0
  %2246 = vmatmul.mubr.f32.gmra.mrb[0].mxu0 %v2174
  %v2247 = vpop.f32.mrb[0].mxu0
  %v2248 = vadd.f32 %v2169, %v2247
  %v2249 = vpop.f32.mrb[0].mxu0
  %2250 = vdwg.mxu0
  %v2251 = vtanh.pop %v2243
  %v2252 = vtanh.pop %v2248
  %v2253 = vld [vmem:[%s3 + $0xf0] sm:$0xff]
  %v2254 = vld [vmem:[%s3 + $0xf8] sm:$0xff]
  %v2255 = vld [vmem:[%s3 + $0x100] sm:$0xff]
  %v2256 = vld [vmem:[%s3 + $0x108] sm:$0xff]
  %v2257 = vld [vmem:[%s3 + $0x110] sm:$0x1]
  %v2258 = vlaneseq
  %v2259 = vshrl.u32 %v2258, 7
  %v2260 = vsub.s32 0, %v2259
  %v2261 = vrot.slane %v2257, %v2260
  %v2263 = vsel %vm180, %v2251, 0
  %v2266 = vsel %vm180, %v2252, 0
  %2268 = vmatprep.subr.mxu0 0.0
  %2269 = vmatpush1.msra.mxu0 %v2253
  %2270 = vmatprep.subr.mxu0 0.0
  %2271 = vmatpush1.msra.mxu0 %v2254
  %2272 = vmatprep.subr.mxu0 0.0
  %2273 = vmatpush1.msra.mxu0 %v2255
  %2274 = vmatprep.subr.mxu0 0.0
  %2275 = vmatpush1.msra.mxu0 %v2256
  %2276 = vmatprep.subr.mxu0 0.0
  %2277 = vmatpush1.msra.mxu0 0.0
  %2278 = vmatprep.subr.mxu0 0.0
  %2279 = vmatpush1.msra.mxu0 0.0
  %2280 = vmatprep.subr.mxu0 0.0
  %2281 = vmatpush1.msra.mxu0 0.0
  %2282 = vmatprep.subr.mxu0 0.0
  %2283 = vmatpush1.msra.mxu0 0.0
  %2284 = vmatprep.subr.mxu0 0.0
  %2285 = vmatpush1.msra.mxu0 0.0
  %2286 = vmatprep.subr.mxu0 0.0
  %2287 = vmatpush1.msra.mxu0 0.0
  %2288 = vmatprep.subr.mxu0 0.0
  %2289 = vmatpush1.msra.mxu0 0.0
  %2290 = vmatprep.subr.mxu0 0.0
  %2291 = vmatpush1.msra.mxu0 0.0
  %2292 = vmatprep.subr.mxu0 0.0
  %2293 = vmatpush1.msra.mxu0 0.0
  %2294 = vmatprep.subr.mxu0 0.0
  %2295 = vmatpush1.msra.mxu0 0.0
  %2296 = vmatprep.subr.mxu0 0.0
  %2297 = vmatpush1.msra.mxu0 0.0
  %2298 = vmatprep.subr.mxu0 0.0
  %2299 = vmatpush1.msra.mxu0 0.0
  %2300 = vmatprep.subr.mxu0 0.0
  %2301 = vmatpush1.msra.mxu0 0.0
  %2302 = vmatprep.subr.mxu0 0.0
  %2303 = vmatpush1.msra.mxu0 0.0
  %2304 = vmatprep.subr.mxu0 0.0
  %2305 = vmatpush1.msra.mxu0 0.0
  %2306 = vmatprep.subr.mxu0 0.0
  %2307 = vmatpush1.msra.mxu0 0.0
  %2308 = vmatprep.subr.mxu0 0.0
  %2309 = vmatpush1.msra.mxu0 0.0
  %2310 = vmatprep.subr.mxu0 0.0
  %2311 = vmatpush1.msra.mxu0 0.0
  %2312 = vmatprep.subr.mxu0 0.0
  %2313 = vmatpush1.msra.mxu0 0.0
  %2314 = vmatprep.subr.mxu0 0.0
  %2315 = vmatpush1.msra.mxu0 0.0
  %2316 = vmatprep.subr.mxu0 0.0
  %2317 = vmatpush1.msra.mxu0 0.0
  %2318 = vmatprep.subr.mxu0 0.0
  %2319 = vmatpush1.msra.mxu0 0.0
  %2320 = vmatprep.subr.mxu0 0.0
  %2321 = vmatpush1.msra.mxu0 0.0
  %2322 = vmatprep.subr.mxu0 0.0
  %2323 = vmatpush1.msra.mxu0 0.0
  %2324 = vmatprep.subr.mxu0 0.0
  %2325 = vmatpush1.msra.mxu0 0.0
  %2326 = vmatprep.subr.mxu0 0.0
  %2327 = vmatpush1.msra.mxu0 0.0
  %2328 = vmatprep.subr.mxu0 0.0
  %2329 = vmatpush1.msra.mxu0 0.0
  %2330 = vmatprep.subr.mxu0 0.0
  %2331 = vmatpush1.msra.mxu0 0.0
  %2332 = vmatprep.mubr.f32.mxu0 0.0
  %2333 = vmatmul.mubr.f32.gmra.mrb[0].mxu0 %v2263
  %v2334 = vpop.f32.mrb[0].mxu0
  %v2335 = vadd.f32 %v2261, %v2334
  %v2336 = vpop.f32.mrb[0].mxu0
  %2337 = vmatprep.mubr.f32.mxu0 0.0
  %2338 = vmatmul.mubr.f32.gmra.mrb[0].mxu0 %v2266
  %v2339 = vpop.f32.mrb[0].mxu0
  %v2340 = vadd.f32 %v2261, %v2339
  %v2341 = vpop.f32.mrb[0].mxu0
  %2342 = vdwg.mxu0
  %2343 = vst [vmem:[%s4] sm:$0xff] %v2335
  %2344 = vst [vmem:[%s4 + $0x8] sm:$0xff] %v2340
  // Predicated region
  $region18: #{transformer_classifier_forward.1} parent=0 // pred_check
    _
  $region19: #{transformer_classifier_forward.1} parent=0 // pred_check_branch
    %2346 = sbr.rel (0) target = $region21
  $region20: #{transformer_classifier_forward.1} parent=0 // pred_region
    _
  $region21: #{transformer_classifier_forward.1} parent=0 // pred_fallthru
    _
  // Predicated region
  $region22: #{transformer_classifier_forward.1} parent=0 // pred_check
    _
  $region23: #{transformer_classifier_forward.1} parent=0 // pred_check_branch
    %2348 = sbr.rel (0) target = $region25
  $region24: #{transformer_classifier_forward.1} parent=0 // pred_region
    _
  $region25: #{transformer_classifier_forward.1} parent=0 // pred_fallthru
    _

</llo_original>
